<compile_context>
chip_gen: v5e
topology: v5e:2x2
jax: 0.10.0
libtpu: 0.0.40
codegen_flags: <defaults>
</compile_context>

<pallas_src>
import math
import jax
import jax.numpy as jnp
import numpy as np
from jax.experimental import pallas as pl
from jax.experimental.pallas import tpu as pltpu

# ---- model hyper-params (consistent with the PyTorch module) ----
INPUT_DIM  = 16
OUTPUT_DIM = 32          # embed_dim of the attention layers
D_MODEL    = 32          # timestep-embedding dim
NUM_HEADS  = 4           # irrelevant for seq_len == 1 (softmax over 1 key == 1)
NUM_LAYERS = 2
ATTENTION  = True
N_ROWS     = 64          # N (rows of the 2-D input x)
LN_EPS     = 1e-5

D1 = INPUT_DIM + D_MODEL          # 48  enc1 hidden width
D2 = 2 * INPUT_DIM + D_MODEL      # 64  dec3 hidden width
BW = D2                           # bias-slab lane width (max bias width)

# bias-slab row indices (static)
ROW_B1, ROW_B2, ROW_B3 = 0, 1, 2
ROW_C1, ROW_C2, ROW_C3 = 3, 4, 5
ROW_BA   = 6                       # fused attention bias, rows ROW_BA + l
ROW_G    = ROW_BA + NUM_LAYERS     # LayerNorm weight rows
ROW_BETA = ROW_G + NUM_LAYERS      # LayerNorm bias rows
N_BIAS_ROWS = ROW_BETA + NUM_LAYERS  # 12


# ----------------------------- in-kernel math helpers -----------------------------
def _erf_poly(z):
    # Abramowitz & Stegun 7.1.26 (|abs err| < ~1e-3 with approx reciprocal).
    a1, a2, a3, a4, a5 = 0.254829592, -0.284496736, 1.421413741, -1.453152027, 1.061405429
    p = 0.3275911
    az = jnp.abs(z)
    t = pl.reciprocal(1.0 + p * az, approx=True)   # EUP vrcp, off the VALU chain
    poly = ((((a5 * t + a4) * t + a3) * t + a2) * t + a1) * t
    y = 1.0 - poly * jnp.exp(-az * az)
    return jnp.where(z >= 0.0, y, -y)


def _gelu_exact(x):
    # PyTorch nn.GELU() default: x * 0.5 * (1 + erf(x / sqrt(2)))
    return 0.5 * x * (1.0 + _erf_poly(x * 0.7071067811865476))


# ----------------------------------- the kernel -----------------------------------
def satts_kernel(x_ref,
                 w1x_ref, w2_ref, w3_ref,
                 v1x_ref, v1h_ref, v2_ref, v3_ref,
                 wa_ref, bias_ref,
                 o_ref):
    f32 = jnp.float32
    x = x_ref[...]                                           # (N, INPUT_DIM)

    # enc1: emb contribution folded into b1'; no concatenation needed.
    h = _gelu_exact(jnp.dot(x, w1x_ref[...], preferred_element_type=f32)
                    + bias_ref[ROW_B1:ROW_B1 + 1, :D1])
    h = _gelu_exact(jnp.dot(h, w2_ref[...], preferred_element_type=f32)
                    + bias_ref[ROW_B2:ROW_B2 + 1, :D1])
    h = (jnp.dot(h, w3_ref[...], preferred_element_type=f32)
         + bias_ref[ROW_B3:ROW_B3 + 1, :INPUT_DIM])          # (N, INPUT_DIM)

    # dec3: cat(x, h, emb) @ v1  ==  x@v1[:16] + h@v1[16:32] + c1'   (emb folded)
    d = _gelu_exact(jnp.dot(x, v1x_ref[...], preferred_element_type=f32)
                    + jnp.dot(h, v1h_ref[...], preferred_element_type=f32)
                    + bias_ref[ROW_C1:ROW_C1 + 1, :D2])
    d = _gelu_exact(jnp.dot(d, v2_ref[...], preferred_element_type=f32)
                    + bias_ref[ROW_C2:ROW_C2 + 1, :D2])
    z = (jnp.dot(d, v3_ref[...], preferred_element_type=f32)
         + bias_ref[ROW_C3:ROW_C3 + 1, :OUTPUT_DIM])         # (N, OUTPUT_DIM)

    # attention layers: seq_len == 1 -> softmax == 1 -> out_proj(v_proj(z)).
    # wv@wo and bv@wo+bo were fused host-side, so it's one matmul per layer.
    if ATTENTION:
        for l in range(NUM_LAYERS):
            ba   = bias_ref[ROW_BA + l:ROW_BA + l + 1, :OUTPUT_DIM]
            g    = bias_ref[ROW_G + l:ROW_G + l + 1, :OUTPUT_DIM]
            beta = bias_ref[ROW_BETA + l:ROW_BETA + l + 1, :OUTPUT_DIM]
            attn = jnp.dot(z, wa_ref[l], preferred_element_type=f32) + ba
            y = z + attn
            mu = jnp.mean(y, axis=-1, keepdims=True)
            var = jnp.mean(y * y, axis=-1, keepdims=True) - mu * mu  # single pass
            z = (y - mu) * jax.lax.rsqrt(var + LN_EPS) * g + beta

    o_ref[...] = z


# ------------------------------------- glue ---------------------------------------
def get_timestep_embedding(ts, embedding_dim):
    half_dim = embedding_dim // 2
    scale = math.log(10000.0) / (half_dim - 1)
    freq = jnp.exp(jnp.arange(half_dim, dtype=jnp.float32) * -scale)
    ang = jnp.float32(ts) * freq
    emb = jnp.concatenate([jnp.sin(ang), jnp.cos(ang)])[None, :]
    if embedding_dim % 2 == 1:
        emb = jnp.pad(emb, ((0, 0), (0, 1)))
    return emb                                # (1, embedding_dim)


def init_params(key):
    keys = jax.random.split(key, 18)
    E = OUTPUT_DIM

    def w(k, shape, scale=0.1):
        return scale * jax.random.normal(k, shape, jnp.float32)

    # Weights stored in (in_features, out_features) layout so the kernel does x @ W.
    return {
        "w1": w(keys[0], (D1, D1)),  "b1": w(keys[1], (1, D1), 0.02),
        "w2": w(keys[2], (D1, D1)),  "b2": w(keys[3], (1, D1), 0.02),
        "w3": w(keys[4], (D1, INPUT_DIM)), "b3": w(keys[5], (1, INPUT_DIM), 0.02),
        "v1": w(keys[6], (D2, D2)),  "c1": w(keys[7], (1, D2), 0.02),
        "v2": w(keys[8], (D2, D2)),  "c2": w(keys[9], (1, D2), 0.02),
        "v3": w(keys[10], (D2, E)),  "c3": w(keys[11], (1, E), 0.02),
        "wv": w(keys[12], (NUM_LAYERS, E, E)),
        "bv": w(keys[13], (NUM_LAYERS, 1, E), 0.02),
        "wo": w(keys[14], (NUM_LAYERS, E, E)),
        "bo": w(keys[15], (NUM_LAYERS, 1, E), 0.02),
        "g":  1.0 + w(keys[16], (NUM_LAYERS, 1, E), 0.05),   # LayerNorm weight
        "beta": w(keys[17], (NUM_LAYERS, 1, E), 0.05),       # LayerNorm bias
    }


def _prepare_kernel_inputs(params, ts):
    """Host-side (tiny) algebra: fold emb into first-layer biases, fuse wv@wo,
    and pack all bias/LayerNorm vectors into one (12, BW) slab."""
    e_row = get_timestep_embedding(ts, D_MODEL)              # (1, D_MODEL)

    w1, v1 = params["w1"], params["v1"]
    w1x = w1[:INPUT_DIM]                                     # (16, 48)
    b1p = params["b1"] + e_row @ w1[INPUT_DIM:]              # (1, 48)
    v1x = v1[:INPUT_DIM]                                     # (16, 64)
    v1h = v1[INPUT_DIM:2 * INPUT_DIM]                        # (16, 64)
    c1p = params["c1"] + e_row @ v1[2 * INPUT_DIM:]          # (1, 64)

    # Fused attention (softmax over a length-1 key axis is exactly 1):
    #   attn = z @ (wv @ wo) + (bv @ wo + bo)
    wa = jnp.einsum("lij,ljk->lik", params["wv"], params["wo"])                   # (L, E, E)
    ba = jnp.einsum("lij,ljk->lik", params["bv"], params["wo"]) + params["bo"]    # (L, 1, E)

    def pad_row(v):
        v = jnp.reshape(v, (1, -1))
        return jnp.pad(v, ((0, 0), (0, BW - v.shape[-1])))

    rows = [pad_row(b1p), pad_row(params["b2"]), pad_row(params["b3"]),
            pad_row(c1p), pad_row(params["c2"]), pad_row(params["c3"])]
    rows += [pad_row(ba[l]) for l in range(NUM_LAYERS)]
    rows += [pad_row(params["g"][l]) for l in range(NUM_LAYERS)]
    rows += [pad_row(params["beta"][l]) for l in range(NUM_LAYERS)]
    bias_slab = jnp.concatenate(rows, axis=0)                # (N_BIAS_ROWS, BW)
    assert bias_slab.shape == (N_BIAS_ROWS, BW)

    return (w1x, params["w2"], params["w3"],
            v1x, v1h, params["v2"], params["v3"],
            wa, bias_slab)


def self_attention_time_series(x, ts, params):
    n = x.shape[0]
    kernel_weights = _prepare_kernel_inputs(params, ts)
    inputs = (x,) + kernel_weights

    def full(a):
        nd = a.ndim
        return pl.BlockSpec(a.shape, lambda i, _nd=nd: (0,) * _nd)

    out = pl.pallas_call(
        satts_kernel,
        out_shape=jax.ShapeDtypeStruct((n, OUTPUT_DIM), jnp.float32),
        grid=(1,),                                           # single program: whole problem fits VMEM
        in_specs=[full(a) for a in inputs],
        out_specs=pl.BlockSpec((n, OUTPUT_DIM), lambda i: (0, 0)),
        compiler_params=pltpu.CompilerParams(dimension_semantics=("arbitrary",)),
    )(*inputs)

    return out[None]   # (1, N, OUTPUT_DIM) — matches torch's unsqueeze(0)


# ----------------------------- pure-JAX reference ---------------------------------
def reference_forward(x, ts, params):
    n = x.shape[0]
    emb = jnp.tile(get_timestep_embedding(ts, D_MODEL), (n, 1))
    gelu = lambda u: jax.nn.gelu(u, approximate=False)

    h = jnp.concatenate([x, emb], -1)
    h = gelu(h @ params["w1"] + params["b1"])
    h = gelu(h @ params["w2"] + params["b2"])
    h = h @ params["w3"] + params["b3"]

    d = jnp.concatenate([x, h, emb], -1)
    d = gelu(d @ params["v1"] + params["c1"])
    d = gelu(d @ params["v2"] + params["c2"])
    z = d @ params["v3"] + params["c3"]

    if ATTENTION:
        for l in range(NUM_LAYERS):
            v = z @ params["wv"][l] + params["bv"][l]
            attn = v @ params["wo"][l] + params["bo"][l]
            y = z + attn
            mu = jnp.mean(y, -1, keepdims=True)
            var = jnp.mean((y - mu) ** 2, -1, keepdims=True)
            z = (y - mu) / jnp.sqrt(var + LN_EPS) * params["g"][l] + params["beta"][l]
    return z[None]


# ------------------------------------- main ---------------------------------------
if __name__ == "__main__":
    key = jax.random.PRNGKey(0)
    pkey, xkey = jax.random.split(key)
    params = init_params(pkey)
    x = jax.random.normal(xkey, (N_ROWS, INPUT_DIM), jnp.float32)   # 2-D input path of forward()
    ts = 7                                                          # scalar diffusion timestep

    out = self_attention_time_series(x, ts, params)
    out = jax.block_until_ready(out)

    ref = reference_forward(x, ts, params)
    np.testing.assert_allclose(np.asarray(out), np.asarray(ref), rtol=2e-2, atol=2e-2)
    assert out.shape == (1, N_ROWS, OUTPUT_DIM)
    print("KERNEL_OK")
</pallas_src>

<mosaic_0001>
module attributes {stable_mosaic.version = 11 : i64} {
  func.func @satts_kernel(%arg0: i32, %arg1: memref<64x16xf32, #tpu.memory_space<vmem>>, %arg2: memref<16x48xf32, #tpu.memory_space<vmem>>, %arg3: memref<48x48xf32, #tpu.memory_space<vmem>>, %arg4: memref<48x16xf32, #tpu.memory_space<vmem>>, %arg5: memref<16x64xf32, #tpu.memory_space<vmem>>, %arg6: memref<16x64xf32, #tpu.memory_space<vmem>>, %arg7: memref<64x64xf32, #tpu.memory_space<vmem>>, %arg8: memref<64x32xf32, #tpu.memory_space<vmem>>, %arg9: memref<2x32x32xf32, #tpu.memory_space<vmem>>, %arg10: memref<12x64xf32, #tpu.memory_space<vmem>>, %arg11: memref<64x32xf32, #tpu.memory_space<vmem>>) attributes {dimension_semantics = [#tpu.dimension_semantics<arbitrary>], iteration_bounds = array<i64: 1>, scalar_prefetch = 0 : i64, scratch_operands = 0 : i64, tpu.core_type = #tpu.core_type<tc>, window_params = [{pipeline_mode = #tpu.pipeline_mode<synchronous>, transform_indices = @transform_0, window_bounds = array<i64: 64, 16>}, {pipeline_mode = #tpu.pipeline_mode<synchronous>, transform_indices = @transform_1, window_bounds = array<i64: 16, 48>}, {pipeline_mode = #tpu.pipeline_mode<synchronous>, transform_indices = @transform_2, window_bounds = array<i64: 48, 48>}, {pipeline_mode = #tpu.pipeline_mode<synchronous>, transform_indices = @transform_3, window_bounds = array<i64: 48, 16>}, {pipeline_mode = #tpu.pipeline_mode<synchronous>, transform_indices = @transform_4, window_bounds = array<i64: 16, 64>}, {pipeline_mode = #tpu.pipeline_mode<synchronous>, transform_indices = @transform_5, window_bounds = array<i64: 16, 64>}, {pipeline_mode = #tpu.pipeline_mode<synchronous>, transform_indices = @transform_6, window_bounds = array<i64: 64, 64>}, {pipeline_mode = #tpu.pipeline_mode<synchronous>, transform_indices = @transform_7, window_bounds = array<i64: 64, 32>}, {pipeline_mode = #tpu.pipeline_mode<synchronous>, transform_indices = @transform_8, window_bounds = array<i64: 2, 32, 32>}, {pipeline_mode = #tpu.pipeline_mode<synchronous>, transform_indices = @transform_9, window_bounds = array<i64: 12, 64>}, {pipeline_mode = #tpu.pipeline_mode<synchronous>, transform_indices = @transform_10, window_bounds = array<i64: 64, 32>}]} {
    %c0 = arith.constant 0 : index
    %c0_0 = arith.constant 0 : index
    %0 = vector.load %arg1[%c0, %c0_0] : memref<64x16xf32, #tpu.memory_space<vmem>>, vector<64x16xf32>
    %c0_1 = arith.constant 0 : index
    %c0_2 = arith.constant 0 : index
    %1 = vector.load %arg2[%c0_1, %c0_2] : memref<16x48xf32, #tpu.memory_space<vmem>>, vector<16x48xf32>
    %cst = arith.constant dense<0.000000e+00> : vector<64x48xf32>
    %2 = tpu.matmul %0, %1, %cst {dimension_numbers = #tpu.dot_dimension_numbers<[1], [0], [0], [1], [0, 0, 1, 1], [], []>} : vector<64x16xf32>, vector<16x48xf32>, vector<64x48xf32> -> vector<64x48xf32>
    %c0_3 = arith.constant 0 : index
    %c0_4 = arith.constant 0 : index
    %3 = vector.load %arg10[%c0_3, %c0_4] : memref<12x64xf32, #tpu.memory_space<vmem>>, vector<1x48xf32>
    %4 = vector.broadcast %3 : vector<1x48xf32> to vector<64x48xf32>
    %5 = arith.addf %2, %4 : vector<64x48xf32>
    %cst_5 = arith.constant 5.000000e-01 : f32
    %6 = vector.broadcast %cst_5 : f32 to vector<64x48xf32>
    %7 = arith.mulf %6, %5 : vector<64x48xf32>
    %cst_6 = arith.constant 0.707106769 : f32
    %8 = vector.broadcast %cst_6 : f32 to vector<64x48xf32>
    %9 = arith.mulf %5, %8 : vector<64x48xf32>
    %10 = math.absf %9 : vector<64x48xf32>
    %cst_7 = arith.constant 0.327591091 : f32
    %11 = vector.broadcast %cst_7 : f32 to vector<64x48xf32>
    %12 = arith.mulf %11, %10 : vector<64x48xf32>
    %cst_8 = arith.constant 1.000000e+00 : f32
    %13 = vector.broadcast %cst_8 : f32 to vector<64x48xf32>
    %14 = arith.addf %13, %12 : vector<64x48xf32>
    %15 = tpu.reciprocal %14 {approx = true} : vector<64x48xf32> -> vector<64x48xf32>
    %cst_9 = arith.constant 1.06140542 : f32
    %16 = vector.broadcast %cst_9 : f32 to vector<64x48xf32>
    %17 = arith.mulf %16, %15 : vector<64x48xf32>
    %cst_10 = arith.constant -1.45315206 : f32
    %18 = vector.broadcast %cst_10 : f32 to vector<64x48xf32>
    %19 = arith.addf %17, %18 : vector<64x48xf32>
    %20 = arith.mulf %19, %15 : vector<64x48xf32>
    %cst_11 = arith.constant 1.42141378 : f32
    %21 = vector.broadcast %cst_11 : f32 to vector<64x48xf32>
    %22 = arith.addf %20, %21 : vector<64x48xf32>
    %23 = arith.mulf %22, %15 : vector<64x48xf32>
    %cst_12 = arith.constant -0.284496725 : f32
    %24 = vector.broadcast %cst_12 : f32 to vector<64x48xf32>
    %25 = arith.addf %23, %24 : vector<64x48xf32>
    %26 = arith.mulf %25, %15 : vector<64x48xf32>
    %cst_13 = arith.constant 0.254829586 : f32
    %27 = vector.broadcast %cst_13 : f32 to vector<64x48xf32>
    %28 = arith.addf %26, %27 : vector<64x48xf32>
    %29 = arith.mulf %28, %15 : vector<64x48xf32>
    %cst_14 = arith.constant 0.000000e+00 : f32
    %30 = vector.broadcast %cst_14 : f32 to vector<64x48xf32>
    %31 = arith.subf %30, %10 : vector<64x48xf32>
    %32 = arith.mulf %31, %10 : vector<64x48xf32>
    %33 = math.exp %32 : vector<64x48xf32>
    %34 = arith.mulf %29, %33 : vector<64x48xf32>
    %cst_15 = arith.constant 1.000000e+00 : f32
    %35 = vector.broadcast %cst_15 : f32 to vector<64x48xf32>
    %36 = arith.subf %35, %34 : vector<64x48xf32>
    %cst_16 = arith.constant 0.000000e+00 : f32
    %37 = vector.broadcast %cst_16 : f32 to vector<64x48xf32>
    %38 = arith.cmpf oge, %9, %37 : vector<64x48xf32>
    %cst_17 = arith.constant 0.000000e+00 : f32
    %39 = vector.broadcast %cst_17 : f32 to vector<64x48xf32>
    %40 = arith.subf %39, %36 : vector<64x48xf32>
    %41 = arith.select %38, %36, %40 : vector<64x48xi1>, vector<64x48xf32>
    %cst_18 = arith.constant 1.000000e+00 : f32
    %42 = vector.broadcast %cst_18 : f32 to vector<64x48xf32>
    %43 = arith.addf %42, %41 : vector<64x48xf32>
    %44 = arith.mulf %7, %43 : vector<64x48xf32>
    %c0_19 = arith.constant 0 : index
    %c0_20 = arith.constant 0 : index
    %45 = vector.load %arg3[%c0_19, %c0_20] : memref<48x48xf32, #tpu.memory_space<vmem>>, vector<48x48xf32>
    %cst_21 = arith.constant dense<0.000000e+00> : vector<64x48xf32>
    %46 = tpu.matmul %44, %45, %cst_21 {dimension_numbers = #tpu.dot_dimension_numbers<[1], [0], [0], [1], [0, 0, 1, 1], [], []>} : vector<64x48xf32>, vector<48x48xf32>, vector<64x48xf32> -> vector<64x48xf32>
    %c1 = arith.constant 1 : index
    %c0_22 = arith.constant 0 : index
    %47 = vector.load %arg10[%c1, %c0_22] : memref<12x64xf32, #tpu.memory_space<vmem>>, vector<1x48xf32>
    %48 = vector.broadcast %47 : vector<1x48xf32> to vector<64x48xf32>
    %49 = arith.addf %46, %48 : vector<64x48xf32>
    %cst_23 = arith.constant 5.000000e-01 : f32
    %50 = vector.broadcast %cst_23 : f32 to vector<64x48xf32>
    %51 = arith.mulf %50, %49 : vector<64x48xf32>
    %cst_24 = arith.constant 0.707106769 : f32
    %52 = vector.broadcast %cst_24 : f32 to vector<64x48xf32>
    %53 = arith.mulf %49, %52 : vector<64x48xf32>
    %54 = math.absf %53 : vector<64x48xf32>
    %cst_25 = arith.constant 0.327591091 : f32
    %55 = vector.broadcast %cst_25 : f32 to vector<64x48xf32>
    %56 = arith.mulf %55, %54 : vector<64x48xf32>
    %cst_26 = arith.constant 1.000000e+00 : f32
    %57 = vector.broadcast %cst_26 : f32 to vector<64x48xf32>
    %58 = arith.addf %57, %56 : vector<64x48xf32>
    %59 = tpu.reciprocal %58 {approx = true} : vector<64x48xf32> -> vector<64x48xf32>
    %cst_27 = arith.constant 1.06140542 : f32
    %60 = vector.broadcast %cst_27 : f32 to vector<64x48xf32>
    %61 = arith.mulf %60, %59 : vector<64x48xf32>
    %cst_28 = arith.constant -1.45315206 : f32
    %62 = vector.broadcast %cst_28 : f32 to vector<64x48xf32>
    %63 = arith.addf %61, %62 : vector<64x48xf32>
    %64 = arith.mulf %63, %59 : vector<64x48xf32>
    %cst_29 = arith.constant 1.42141378 : f32
    %65 = vector.broadcast %cst_29 : f32 to vector<64x48xf32>
    %66 = arith.addf %64, %65 : vector<64x48xf32>
    %67 = arith.mulf %66, %59 : vector<64x48xf32>
    %cst_30 = arith.constant -0.284496725 : f32
    %68 = vector.broadcast %cst_30 : f32 to vector<64x48xf32>
    %69 = arith.addf %67, %68 : vector<64x48xf32>
    %70 = arith.mulf %69, %59 : vector<64x48xf32>
    %cst_31 = arith.constant 0.254829586 : f32
    %71 = vector.broadcast %cst_31 : f32 to vector<64x48xf32>
    %72 = arith.addf %70, %71 : vector<64x48xf32>
    %73 = arith.mulf %72, %59 : vector<64x48xf32>
    %cst_32 = arith.constant 0.000000e+00 : f32
    %74 = vector.broadcast %cst_32 : f32 to vector<64x48xf32>
    %75 = arith.subf %74, %54 : vector<64x48xf32>
    %76 = arith.mulf %75, %54 : vector<64x48xf32>
    %77 = math.exp %76 : vector<64x48xf32>
    %78 = arith.mulf %73, %77 : vector<64x48xf32>
    %cst_33 = arith.constant 1.000000e+00 : f32
    %79 = vector.broadcast %cst_33 : f32 to vector<64x48xf32>
    %80 = arith.subf %79, %78 : vector<64x48xf32>
    %cst_34 = arith.constant 0.000000e+00 : f32
    %81 = vector.broadcast %cst_34 : f32 to vector<64x48xf32>
    %82 = arith.cmpf oge, %53, %81 : vector<64x48xf32>
    %cst_35 = arith.constant 0.000000e+00 : f32
    %83 = vector.broadcast %cst_35 : f32 to vector<64x48xf32>
    %84 = arith.subf %83, %80 : vector<64x48xf32>
    %85 = arith.select %82, %80, %84 : vector<64x48xi1>, vector<64x48xf32>
    %cst_36 = arith.constant 1.000000e+00 : f32
    %86 = vector.broadcast %cst_36 : f32 to vector<64x48xf32>
    %87 = arith.addf %86, %85 : vector<64x48xf32>
    %88 = arith.mulf %51, %87 : vector<64x48xf32>
    %c0_37 = arith.constant 0 : index
    %c0_38 = arith.constant 0 : index
    %89 = vector.load %arg4[%c0_37, %c0_38] : memref<48x16xf32, #tpu.memory_space<vmem>>, vector<48x16xf32>
    %cst_39 = arith.constant dense<0.000000e+00> : vector<64x16xf32>
    %90 = tpu.matmul %88, %89, %cst_39 {dimension_numbers = #tpu.dot_dimension_numbers<[1], [0], [0], [1], [0, 0, 1, 1], [], []>} : vector<64x48xf32>, vector<48x16xf32>, vector<64x16xf32> -> vector<64x16xf32>
    %c2 = arith.constant 2 : index
    %c0_40 = arith.constant 0 : index
    %91 = vector.load %arg10[%c2, %c0_40] : memref<12x64xf32, #tpu.memory_space<vmem>>, vector<1x16xf32>
    %92 = vector.broadcast %91 : vector<1x16xf32> to vector<64x16xf32>
    %93 = arith.addf %90, %92 : vector<64x16xf32>
    %c0_41 = arith.constant 0 : index
    %c0_42 = arith.constant 0 : index
    %94 = vector.load %arg5[%c0_41, %c0_42] : memref<16x64xf32, #tpu.memory_space<vmem>>, vector<16x64xf32>
    %cst_43 = arith.constant dense<0.000000e+00> : vector<64x64xf32>
    %95 = tpu.matmul %0, %94, %cst_43 {dimension_numbers = #tpu.dot_dimension_numbers<[1], [0], [0], [1], [0, 0, 1, 1], [], []>} : vector<64x16xf32>, vector<16x64xf32>, vector<64x64xf32> -> vector<64x64xf32>
    %c0_44 = arith.constant 0 : index
    %c0_45 = arith.constant 0 : index
    %96 = vector.load %arg6[%c0_44, %c0_45] : memref<16x64xf32, #tpu.memory_space<vmem>>, vector<16x64xf32>
    %cst_46 = arith.constant dense<0.000000e+00> : vector<64x64xf32>
    %97 = tpu.matmul %93, %96, %cst_46 {dimension_numbers = #tpu.dot_dimension_numbers<[1], [0], [0], [1], [0, 0, 1, 1], [], []>} : vector<64x16xf32>, vector<16x64xf32>, vector<64x64xf32> -> vector<64x64xf32>
    %98 = arith.addf %95, %97 : vector<64x64xf32>
    %c3 = arith.constant 3 : index
    %c0_47 = arith.constant 0 : index
    %99 = vector.load %arg10[%c3, %c0_47] : memref<12x64xf32, #tpu.memory_space<vmem>>, vector<1x64xf32>
    %100 = vector.broadcast %99 : vector<1x64xf32> to vector<64x64xf32>
    %101 = arith.addf %98, %100 : vector<64x64xf32>
    %cst_48 = arith.constant 5.000000e-01 : f32
    %102 = vector.broadcast %cst_48 : f32 to vector<64x64xf32>
    %103 = arith.mulf %102, %101 : vector<64x64xf32>
    %cst_49 = arith.constant 0.707106769 : f32
    %104 = vector.broadcast %cst_49 : f32 to vector<64x64xf32>
    %105 = arith.mulf %101, %104 : vector<64x64xf32>
    %106 = math.absf %105 : vector<64x64xf32>
    %cst_50 = arith.constant 0.327591091 : f32
    %107 = vector.broadcast %cst_50 : f32 to vector<64x64xf32>
    %108 = arith.mulf %107, %106 : vector<64x64xf32>
    %cst_51 = arith.constant 1.000000e+00 : f32
    %109 = vector.broadcast %cst_51 : f32 to vector<64x64xf32>
    %110 = arith.addf %109, %108 : vector<64x64xf32>
    %111 = tpu.reciprocal %110 {approx = true} : vector<64x64xf32> -> vector<64x64xf32>
    %cst_52 = arith.constant 1.06140542 : f32
    %112 = vector.broadcast %cst_52 : f32 to vector<64x64xf32>
    %113 = arith.mulf %112, %111 : vector<64x64xf32>
    %cst_53 = arith.constant -1.45315206 : f32
    %114 = vector.broadcast %cst_53 : f32 to vector<64x64xf32>
    %115 = arith.addf %113, %114 : vector<64x64xf32>
    %116 = arith.mulf %115, %111 : vector<64x64xf32>
    %cst_54 = arith.constant 1.42141378 : f32
    %117 = vector.broadcast %cst_54 : f32 to vector<64x64xf32>
    %118 = arith.addf %116, %117 : vector<64x64xf32>
    %119 = arith.mulf %118, %111 : vector<64x64xf32>
    %cst_55 = arith.constant -0.284496725 : f32
    %120 = vector.broadcast %cst_55 : f32 to vector<64x64xf32>
    %121 = arith.addf %119, %120 : vector<64x64xf32>
    %122 = arith.mulf %121, %111 : vector<64x64xf32>
    %cst_56 = arith.constant 0.254829586 : f32
    %123 = vector.broadcast %cst_56 : f32 to vector<64x64xf32>
    %124 = arith.addf %122, %123 : vector<64x64xf32>
    %125 = arith.mulf %124, %111 : vector<64x64xf32>
    %cst_57 = arith.constant 0.000000e+00 : f32
    %126 = vector.broadcast %cst_57 : f32 to vector<64x64xf32>
    %127 = arith.subf %126, %106 : vector<64x64xf32>
    %128 = arith.mulf %127, %106 : vector<64x64xf32>
    %129 = math.exp %128 : vector<64x64xf32>
    %130 = arith.mulf %125, %129 : vector<64x64xf32>
    %cst_58 = arith.constant 1.000000e+00 : f32
    %131 = vector.broadcast %cst_58 : f32 to vector<64x64xf32>
    %132 = arith.subf %131, %130 : vector<64x64xf32>
    %cst_59 = arith.constant 0.000000e+00 : f32
    %133 = vector.broadcast %cst_59 : f32 to vector<64x64xf32>
    %134 = arith.cmpf oge, %105, %133 : vector<64x64xf32>
    %cst_60 = arith.constant 0.000000e+00 : f32
    %135 = vector.broadcast %cst_60 : f32 to vector<64x64xf32>
    %136 = arith.subf %135, %132 : vector<64x64xf32>
    %137 = arith.select %134, %132, %136 : vector<64x64xi1>, vector<64x64xf32>
    %cst_61 = arith.constant 1.000000e+00 : f32
    %138 = vector.broadcast %cst_61 : f32 to vector<64x64xf32>
    %139 = arith.addf %138, %137 : vector<64x64xf32>
    %140 = arith.mulf %103, %139 : vector<64x64xf32>
    %c0_62 = arith.constant 0 : index
    %c0_63 = arith.constant 0 : index
    %141 = vector.load %arg7[%c0_62, %c0_63] : memref<64x64xf32, #tpu.memory_space<vmem>>, vector<64x64xf32>
    %cst_64 = arith.constant dense<0.000000e+00> : vector<64x64xf32>
    %142 = tpu.matmul %140, %141, %cst_64 {dimension_numbers = #tpu.dot_dimension_numbers<[1], [0], [0], [1], [0, 0, 1, 1], [], []>} : vector<64x64xf32>, vector<64x64xf32>, vector<64x64xf32> -> vector<64x64xf32>
    %c4 = arith.constant 4 : index
    %c0_65 = arith.constant 0 : index
    %143 = vector.load %arg10[%c4, %c0_65] : memref<12x64xf32, #tpu.memory_space<vmem>>, vector<1x64xf32>
    %144 = vector.broadcast %143 : vector<1x64xf32> to vector<64x64xf32>
    %145 = arith.addf %142, %144 : vector<64x64xf32>
    %cst_66 = arith.constant 5.000000e-01 : f32
    %146 = vector.broadcast %cst_66 : f32 to vector<64x64xf32>
    %147 = arith.mulf %146, %145 : vector<64x64xf32>
    %cst_67 = arith.constant 0.707106769 : f32
    %148 = vector.broadcast %cst_67 : f32 to vector<64x64xf32>
    %149 = arith.mulf %145, %148 : vector<64x64xf32>
    %150 = math.absf %149 : vector<64x64xf32>
    %cst_68 = arith.constant 0.327591091 : f32
    %151 = vector.broadcast %cst_68 : f32 to vector<64x64xf32>
    %152 = arith.mulf %151, %150 : vector<64x64xf32>
    %cst_69 = arith.constant 1.000000e+00 : f32
    %153 = vector.broadcast %cst_69 : f32 to vector<64x64xf32>
    %154 = arith.addf %153, %152 : vector<64x64xf32>
    %155 = tpu.reciprocal %154 {approx = true} : vector<64x64xf32> -> vector<64x64xf32>
    %cst_70 = arith.constant 1.06140542 : f32
    %156 = vector.broadcast %cst_70 : f32 to vector<64x64xf32>
    %157 = arith.mulf %156, %155 : vector<64x64xf32>
    %cst_71 = arith.constant -1.45315206 : f32
    %158 = vector.broadcast %cst_71 : f32 to vector<64x64xf32>
    %159 = arith.addf %157, %158 : vector<64x64xf32>
    %160 = arith.mulf %159, %155 : vector<64x64xf32>
    %cst_72 = arith.constant 1.42141378 : f32
    %161 = vector.broadcast %cst_72 : f32 to vector<64x64xf32>
    %162 = arith.addf %160, %161 : vector<64x64xf32>
    %163 = arith.mulf %162, %155 : vector<64x64xf32>
    %cst_73 = arith.constant -0.284496725 : f32
    %164 = vector.broadcast %cst_73 : f32 to vector<64x64xf32>
    %165 = arith.addf %163, %164 : vector<64x64xf32>
    %166 = arith.mulf %165, %155 : vector<64x64xf32>
    %cst_74 = arith.constant 0.254829586 : f32
    %167 = vector.broadcast %cst_74 : f32 to vector<64x64xf32>
    %168 = arith.addf %166, %167 : vector<64x64xf32>
    %169 = arith.mulf %168, %155 : vector<64x64xf32>
    %cst_75 = arith.constant 0.000000e+00 : f32
    %170 = vector.broadcast %cst_75 : f32 to vector<64x64xf32>
    %171 = arith.subf %170, %150 : vector<64x64xf32>
    %172 = arith.mulf %171, %150 : vector<64x64xf32>
    %173 = math.exp %172 : vector<64x64xf32>
    %174 = arith.mulf %169, %173 : vector<64x64xf32>
    %cst_76 = arith.constant 1.000000e+00 : f32
    %175 = vector.broadcast %cst_76 : f32 to vector<64x64xf32>
    %176 = arith.subf %175, %174 : vector<64x64xf32>
    %cst_77 = arith.constant 0.000000e+00 : f32
    %177 = vector.broadcast %cst_77 : f32 to vector<64x64xf32>
    %178 = arith.cmpf oge, %149, %177 : vector<64x64xf32>
    %cst_78 = arith.constant 0.000000e+00 : f32
    %179 = vector.broadcast %cst_78 : f32 to vector<64x64xf32>
    %180 = arith.subf %179, %176 : vector<64x64xf32>
    %181 = arith.select %178, %176, %180 : vector<64x64xi1>, vector<64x64xf32>
    %cst_79 = arith.constant 1.000000e+00 : f32
    %182 = vector.broadcast %cst_79 : f32 to vector<64x64xf32>
    %183 = arith.addf %182, %181 : vector<64x64xf32>
    %184 = arith.mulf %147, %183 : vector<64x64xf32>
    %c0_80 = arith.constant 0 : index
    %c0_81 = arith.constant 0 : index
    %185 = vector.load %arg8[%c0_80, %c0_81] : memref<64x32xf32, #tpu.memory_space<vmem>>, vector<64x32xf32>
    %cst_82 = arith.constant dense<0.000000e+00> : vector<64x32xf32>
    %186 = tpu.matmul %184, %185, %cst_82 {dimension_numbers = #tpu.dot_dimension_numbers<[1], [0], [0], [1], [0, 0, 1, 1], [], []>} : vector<64x64xf32>, vector<64x32xf32>, vector<64x32xf32> -> vector<64x32xf32>
    %c5 = arith.constant 5 : index
    %c0_83 = arith.constant 0 : index
    %187 = vector.load %arg10[%c5, %c0_83] : memref<12x64xf32, #tpu.memory_space<vmem>>, vector<1x32xf32>
    %188 = vector.broadcast %187 : vector<1x32xf32> to vector<64x32xf32>
    %189 = arith.addf %186, %188 : vector<64x32xf32>
    %c6 = arith.constant 6 : index
    %c0_84 = arith.constant 0 : index
    %190 = vector.load %arg10[%c6, %c0_84] : memref<12x64xf32, #tpu.memory_space<vmem>>, vector<1x32xf32>
    %c8 = arith.constant 8 : index
    %c0_85 = arith.constant 0 : index
    %191 = vector.load %arg10[%c8, %c0_85] : memref<12x64xf32, #tpu.memory_space<vmem>>, vector<1x32xf32>
    %c10 = arith.constant 10 : index
    %c0_86 = arith.constant 0 : index
    %192 = vector.load %arg10[%c10, %c0_86] : memref<12x64xf32, #tpu.memory_space<vmem>>, vector<1x32xf32>
    %c0_87 = arith.constant 0 : index
    %c0_88 = arith.constant 0 : index
    %c0_89 = arith.constant 0 : index
    %193 = vector.load %arg9[%c0_87, %c0_88, %c0_89] : memref<2x32x32xf32, #tpu.memory_space<vmem>>, vector<1x32x32xf32>
    %194 = vector.shape_cast %193 : vector<1x32x32xf32> to vector<32x32xf32>
    %cst_90 = arith.constant dense<0.000000e+00> : vector<64x32xf32>
    %195 = tpu.matmul %189, %194, %cst_90 {dimension_numbers = #tpu.dot_dimension_numbers<[1], [0], [0], [1], [0, 0, 1, 1], [], []>} : vector<64x32xf32>, vector<32x32xf32>, vector<64x32xf32> -> vector<64x32xf32>
    %196 = vector.broadcast %190 : vector<1x32xf32> to vector<64x32xf32>
    %197 = arith.addf %195, %196 : vector<64x32xf32>
    %198 = arith.addf %189, %197 : vector<64x32xf32>
    %cst_91 = arith.constant dense<0.000000e+00> : vector<64xf32>
    %199 = vector.multi_reduction <add>, %198, %cst_91 [1] : vector<64x32xf32> to vector<64xf32>
    %200 = vector.shape_cast %199 : vector<64xf32> to vector<64x1xf32>
    %cst_92 = arith.constant 3.200000e+01 : f32
    %201 = vector.broadcast %cst_92 : f32 to vector<64x1xf32>
    %202 = arith.divf %200, %201 : vector<64x1xf32>
    %203 = arith.mulf %198, %198 : vector<64x32xf32>
    %cst_93 = arith.constant dense<0.000000e+00> : vector<64xf32>
    %204 = vector.multi_reduction <add>, %203, %cst_93 [1] : vector<64x32xf32> to vector<64xf32>
    %205 = vector.shape_cast %204 : vector<64xf32> to vector<64x1xf32>
    %cst_94 = arith.constant 3.200000e+01 : f32
    %206 = vector.broadcast %cst_94 : f32 to vector<64x1xf32>
    %207 = arith.divf %205, %206 : vector<64x1xf32>
    %208 = arith.mulf %202, %202 : vector<64x1xf32>
    %209 = arith.subf %207, %208 : vector<64x1xf32>
    %210 = vector.broadcast %202 : vector<64x1xf32> to vector<64x32xf32>
    %211 = arith.subf %198, %210 : vector<64x32xf32>
    %cst_95 = arith.constant 9.99999974E-6 : f32
    %212 = vector.broadcast %cst_95 : f32 to vector<64x1xf32>
    %213 = arith.addf %209, %212 : vector<64x1xf32>
    %214 = math.rsqrt %213 : vector<64x1xf32>
    %215 = vector.broadcast %214 : vector<64x1xf32> to vector<64x32xf32>
    %216 = arith.mulf %211, %215 : vector<64x32xf32>
    %217 = vector.broadcast %191 : vector<1x32xf32> to vector<64x32xf32>
    %218 = arith.mulf %216, %217 : vector<64x32xf32>
    %219 = vector.broadcast %192 : vector<1x32xf32> to vector<64x32xf32>
    %220 = arith.addf %218, %219 : vector<64x32xf32>
    %c7 = arith.constant 7 : index
    %c0_96 = arith.constant 0 : index
    %221 = vector.load %arg10[%c7, %c0_96] : memref<12x64xf32, #tpu.memory_space<vmem>>, vector<1x32xf32>
    %c9 = arith.constant 9 : index
    %c0_97 = arith.constant 0 : index
    %222 = vector.load %arg10[%c9, %c0_97] : memref<12x64xf32, #tpu.memory_space<vmem>>, vector<1x32xf32>
    %c11 = arith.constant 11 : index
    %c0_98 = arith.constant 0 : index
    %223 = vector.load %arg10[%c11, %c0_98] : memref<12x64xf32, #tpu.memory_space<vmem>>, vector<1x32xf32>
    %c1_99 = arith.constant 1 : index
    %c0_100 = arith.constant 0 : index
    %c0_101 = arith.constant 0 : index
    %224 = vector.load %arg9[%c1_99, %c0_100, %c0_101] : memref<2x32x32xf32, #tpu.memory_space<vmem>>, vector<1x32x32xf32>
    %225 = vector.shape_cast %224 : vector<1x32x32xf32> to vector<32x32xf32>
    %cst_102 = arith.constant dense<0.000000e+00> : vector<64x32xf32>
    %226 = tpu.matmul %220, %225, %cst_102 {dimension_numbers = #tpu.dot_dimension_numbers<[1], [0], [0], [1], [0, 0, 1, 1], [], []>} : vector<64x32xf32>, vector<32x32xf32>, vector<64x32xf32> -> vector<64x32xf32>
    %227 = vector.broadcast %221 : vector<1x32xf32> to vector<64x32xf32>
    %228 = arith.addf %226, %227 : vector<64x32xf32>
    %229 = arith.addf %220, %228 : vector<64x32xf32>
    %cst_103 = arith.constant dense<0.000000e+00> : vector<64xf32>
    %230 = vector.multi_reduction <add>, %229, %cst_103 [1] : vector<64x32xf32> to vector<64xf32>
    %231 = vector.shape_cast %230 : vector<64xf32> to vector<64x1xf32>
    %cst_104 = arith.constant 3.200000e+01 : f32
    %232 = vector.broadcast %cst_104 : f32 to vector<64x1xf32>
    %233 = arith.divf %231, %232 : vector<64x1xf32>
    %234 = arith.mulf %229, %229 : vector<64x32xf32>
    %cst_105 = arith.constant dense<0.000000e+00> : vector<64xf32>
    %235 = vector.multi_reduction <add>, %234, %cst_105 [1] : vector<64x32xf32> to vector<64xf32>
    %236 = vector.shape_cast %235 : vector<64xf32> to vector<64x1xf32>
    %cst_106 = arith.constant 3.200000e+01 : f32
    %237 = vector.broadcast %cst_106 : f32 to vector<64x1xf32>
    %238 = arith.divf %236, %237 : vector<64x1xf32>
    %239 = arith.mulf %233, %233 : vector<64x1xf32>
    %240 = arith.subf %238, %239 : vector<64x1xf32>
    %241 = vector.broadcast %233 : vector<64x1xf32> to vector<64x32xf32>
    %242 = arith.subf %229, %241 : vector<64x32xf32>
    %cst_107 = arith.constant 9.99999974E-6 : f32
    %243 = vector.broadcast %cst_107 : f32 to vector<64x1xf32>
    %244 = arith.addf %240, %243 : vector<64x1xf32>
    %245 = math.rsqrt %244 : vector<64x1xf32>
    %246 = vector.broadcast %245 : vector<64x1xf32> to vector<64x32xf32>
    %247 = arith.mulf %242, %246 : vector<64x32xf32>
    %248 = vector.broadcast %222 : vector<1x32xf32> to vector<64x32xf32>
    %249 = arith.mulf %247, %248 : vector<64x32xf32>
    %250 = vector.broadcast %223 : vector<1x32xf32> to vector<64x32xf32>
    %251 = arith.addf %249, %250 : vector<64x32xf32>
    %c0_108 = arith.constant 0 : index
    %c0_109 = arith.constant 0 : index
    %252 = vector.load %arg11[%c0_108, %c0_109] : memref<64x32xf32, #tpu.memory_space<vmem>>, vector<64x32xf32>
    tpu.vector_store %arg11[%c0_108, %c0_109], %251 {strides = array<i32>} : memref<64x32xf32, #tpu.memory_space<vmem>>, vector<64x32xf32>,
    return
  }
  func.func @transform_0(%arg0: i32) -> (i32, i32) {
    %c0_i32 = arith.constant 0 : i32
    %c0_i32_0 = arith.constant 0 : i32
    %c0_i32_1 = arith.constant 0 : i32
    return %c0_i32, %c0_i32_0 : i32, i32
  }
  func.func @transform_1(%arg0: i32) -> (i32, i32) {
    %c0_i32 = arith.constant 0 : i32
    %c0_i32_0 = arith.constant 0 : i32
    %c0_i32_1 = arith.constant 0 : i32
    return %c0_i32, %c0_i32_0 : i32, i32
  }
  func.func @transform_2(%arg0: i32) -> (i32, i32) {
    %c0_i32 = arith.constant 0 : i32
    %c0_i32_0 = arith.constant 0 : i32
    %c0_i32_1 = arith.constant 0 : i32
    return %c0_i32, %c0_i32_0 : i32, i32
  }
  func.func @transform_3(%arg0: i32) -> (i32, i32) {
    %c0_i32 = arith.constant 0 : i32
    %c0_i32_0 = arith.constant 0 : i32
    %c0_i32_1 = arith.constant 0 : i32
    return %c0_i32, %c0_i32_0 : i32, i32
  }
  func.func @transform_4(%arg0: i32) -> (i32, i32) {
    %c0_i32 = arith.constant 0 : i32
    %c0_i32_0 = arith.constant 0 : i32
    %c0_i32_1 = arith.constant 0 : i32
    return %c0_i32, %c0_i32_0 : i32, i32
  }
  func.func @transform_5(%arg0: i32) -> (i32, i32) {
    %c0_i32 = arith.constant 0 : i32
    %c0_i32_0 = arith.constant 0 : i32
    %c0_i32_1 = arith.constant 0 : i32
    return %c0_i32, %c0_i32_0 : i32, i32
  }
  func.func @transform_6(%arg0: i32) -> (i32, i32) {
    %c0_i32 = arith.constant 0 : i32
    %c0_i32_0 = arith.constant 0 : i32
    %c0_i32_1 = arith.constant 0 : i32
    return %c0_i32, %c0_i32_0 : i32, i32
  }
  func.func @transform_7(%arg0: i32) -> (i32, i32) {
    %c0_i32 = arith.constant 0 : i32
    %c0_i32_0 = arith.constant 0 : i32
    %c0_i32_1 = arith.constant 0 : i32
    return %c0_i32, %c0_i32_0 : i32, i32
  }
  func.func @transform_8(%arg0: i32) -> (i32, i32, i32) {
    %c0_i32 = arith.constant 0 : i32
    %c0_i32_0 = arith.constant 0 : i32
    %c0_i32_1 = arith.constant 0 : i32
    %c0_i32_2 = arith.constant 0 : i32
    return %c0_i32, %c0_i32_0, %c0_i32_1 : i32, i32, i32
  }
  func.func @transform_9(%arg0: i32) -> (i32, i32) {
    %c0_i32 = arith.constant 0 : i32
    %c0_i32_0 = arith.constant 0 : i32
    %c0_i32_1 = arith.constant 0 : i32
    return %c0_i32, %c0_i32_0 : i32, i32
  }
  func.func @transform_10(%arg0: i32) -> (i32, i32) {
    %c0_i32 = arith.constant 0 : i32
    %c0_i32_0 = arith.constant 0 : i32
    %c0_i32_1 = arith.constant 0 : i32
    return %c0_i32, %c0_i32_0 : i32, i32
  }
}

</mosaic_0001>

<llo_original>
// kernel: tpu_custom_call.1
$region0: #{tpu_custom_call.1}
  #allocation0 [shape = 'u32[]', space=smem, size = 0x4, offset = 0x4, fixed_abs, tag = 'smem constant byte address 0x4 - core index']
  #allocation1 [shape = 'u32[72,128]{1,0:T(1,128)}', space=vmem, size = 0x9000, scoped, tag = 'internal scratch']
  %s0 = inlined_call_operand.vmem [shape: f32[64,16], index: 0, kind: input, shape index: {}]
  %s1 = inlined_call_operand.vmem [shape: f32[16,48], index: 1, kind: input, shape index: {}]
  %s2 = inlined_call_operand.vmem [shape: f32[48,48], index: 2, kind: input, shape index: {}]
  %s3 = inlined_call_operand.vmem [shape: f32[48,16], index: 3, kind: input, shape index: {}]
  %s4 = inlined_call_operand.hbm [shape: f32[16,64], index: 4, kind: input, shape index: {}]
  %s5 = inlined_call_operand.hbm [shape: f32[16,64], index: 5, kind: input, shape index: {}]
  %s6 = inlined_call_operand.vmem [shape: f32[64,64], index: 6, kind: input, shape index: {}]
  %s7 = inlined_call_operand.vmem [shape: f32[64,32], index: 7, kind: input, shape index: {}]
  %s8 = inlined_call_operand.vmem [shape: f32[2,32,32], index: 8, kind: input, shape index: {}]
  %s9 = inlined_call_operand.hbm [shape: f32[12,64], index: 9, kind: input, shape index: {}]
  %s10 = inlined_call_operand.vmem [shape: f32[64,32], index: 10, kind: output, shape index: {}]
  %s11 = sld [smem:[#allocation0]]
  $region62: #{tpu_custom_call.1} parent=0
    _
  %s13 = ssub.s32 1, %s11
  %s14 = scalar_select 0, %s13, %s11
  $region1: #{tpu_custom_call.1} parent=0
    #allocation2 [shape = 'u8[8192]{0}', space=vmem, size = 0x2000, scoped, tag = 'input window, operand 4, single buffered']
    #allocation3 [shape = 's32[1]{0}', space=sflag, size = 0x4, scoped, tag = 'scoped memory for tpu_custom_call.1']
    #allocation4 [shape = 'u8[8192]{0}', space=vmem, size = 0x2000, scoped, tag = 'input window, operand 5, single buffered']
    #allocation5 [shape = 's32[1]{0}', space=sflag, size = 0x4, scoped, tag = 'scoped memory for tpu_custom_call.1']
    #allocation6 [shape = 'u8[8192]{0}', space=vmem, size = 0x2000, scoped, tag = 'input window, operand 9, single buffered']
    %15 = vsyncpa [#allocation3], 0
    %16 = vsyncpa [#allocation5], 0
    // Predicated region
    $region2: #{tpu_custom_call.1} parent=1 // pred_check
      _
    $region3: #{tpu_custom_call.1} parent=1 // pred_check_branch
      %18 = sbr.rel (0) target = $region5
    $region4: #{tpu_custom_call.1} parent=1 // pred_region
      _
    $region5: #{tpu_custom_call.1} parent=1 // pred_fallthru
      _
    // Predicated region
    $region6: #{tpu_custom_call.1} parent=1 // pred_check
      _
    $region7: #{tpu_custom_call.1} parent=1 // pred_check_branch
      %20 = sbr.rel (0) target = $region9
    $region8: #{tpu_custom_call.1} parent=1 // pred_region
      _
    $region9: #{tpu_custom_call.1} parent=1 // pred_fallthru
      _
    // Predicated region
    $region10: #{tpu_custom_call.1} parent=1 // pred_check
      _
    $region11: #{tpu_custom_call.1} parent=1 // pred_check_branch
      %22 = sbr.rel (0) target = $region13
    $region12: #{tpu_custom_call.1} parent=1 // pred_region
      _
    $region13: #{tpu_custom_call.1} parent=1 // pred_fallthru
      _
    // Predicated region
    $region14: #{tpu_custom_call.1} parent=1 // pred_check
      _
    $region15: #{tpu_custom_call.1} parent=1 // pred_check_branch
      %24 = sbr.rel (0) target = $region17
    $region16: #{tpu_custom_call.1} parent=1 // pred_region
      _
    $region17: #{tpu_custom_call.1} parent=1 // pred_fallthru
      _
    // Predicated region
    $region18: #{tpu_custom_call.1} parent=1 // pred_check
      _
    $region19: #{tpu_custom_call.1} parent=1 // pred_check_branch
      %26 = sbr.rel (0) target = $region21
    $region20: #{tpu_custom_call.1} parent=1 // pred_region
      %28 = vsyncadd [#allocation3], 0
      %s29 = sshll.u32 %s4, 4
      %s30 = int_to_ptr.hbm [resolvable:$true] %s29
      %s31 = sshll.u32 [#allocation2], 4
      %s32 = int_to_ptr.vmem [resolvable:$true] %s31
      %37 = dma.hbm_to_vmem [thread:$0]  %s30, 256, %s32, [#allocation3], 128, 128, 8
    $region21: #{tpu_custom_call.1} parent=1 // pred_fallthru
      _
    // Predicated region
    $region22: #{tpu_custom_call.1} parent=1 // pred_check
      _
    $region23: #{tpu_custom_call.1} parent=1 // pred_check_branch
      %39 = sbr.rel (0) target = $region25
    $region24: #{tpu_custom_call.1} parent=1 // pred_region
      %41 = vsyncadd [#allocation5], 0
      %s42 = sshll.u32 %s5, 4
      %s43 = int_to_ptr.hbm [resolvable:$true] %s42
      %s44 = sshll.u32 [#allocation4], 4
      %s45 = int_to_ptr.vmem [resolvable:$true] %s44
      %50 = dma.hbm_to_vmem [thread:$0]  %s43, 256, %s45, [#allocation5], 128, 128, 8
    $region25: #{tpu_custom_call.1} parent=1 // pred_fallthru
      _
    // Predicated region
    $region26: #{tpu_custom_call.1} parent=1 // pred_check
      _
    $region27: #{tpu_custom_call.1} parent=1 // pred_check_branch
      %52 = sbr.rel (0) target = $region29
    $region28: #{tpu_custom_call.1} parent=1 // pred_region
      _
    $region29: #{tpu_custom_call.1} parent=1 // pred_fallthru
      _
    // Predicated region
    $region30: #{tpu_custom_call.1} parent=1 // pred_check
      _
    $region31: #{tpu_custom_call.1} parent=1 // pred_check_branch
      %54 = sbr.rel (0) target = $region33
    $region32: #{tpu_custom_call.1} parent=1 // pred_region
      _
    $region33: #{tpu_custom_call.1} parent=1 // pred_fallthru
      _
    // Predicated region
    $region34: #{tpu_custom_call.1} parent=1 // pred_check
      _
    $region35: #{tpu_custom_call.1} parent=1 // pred_check_branch
      %56 = sbr.rel (0) target = $region37
    $region36: #{tpu_custom_call.1} parent=1 // pred_region
      _
    $region37: #{tpu_custom_call.1} parent=1 // pred_fallthru
      _
    // Predicated region
    $region38: #{tpu_custom_call.1} parent=1 // pred_check
      _
    $region39: #{tpu_custom_call.1} parent=1 // pred_check_branch
      %58 = sbr.rel (0) target = $region41
    $region40: #{tpu_custom_call.1} parent=1 // pred_region
      %60 = vsyncadd [#allocation5], 0
      %s61 = sshll.u32 %s9, 4
      %s62 = int_to_ptr.hbm [resolvable:$true] %s61
      %s63 = sshll.u32 [#allocation6], 4
      %s64 = int_to_ptr.vmem [resolvable:$true] %s63
      %69 = dma.hbm_to_vmem [thread:$0]  %s62, 256, %s64, [#allocation5], 128, 128, 8
    $region41: #{tpu_custom_call.1} parent=1 // pred_fallthru
      _
    // Predicated region
    $region42: #{tpu_custom_call.1} parent=1 // pred_check
      _
    $region43: #{tpu_custom_call.1} parent=1 // pred_check_branch
      %71 = sbr.rel (0) target = $region45
    $region44: #{tpu_custom_call.1} parent=1 // pred_region
      %73 = dma.done [#allocation3], 256
    $region45: #{tpu_custom_call.1} parent=1 // pred_fallthru
      _
    // Predicated region
    $region46: #{tpu_custom_call.1} parent=1 // pred_check
      _
    $region47: #{tpu_custom_call.1} parent=1 // pred_check_branch
      %75 = sbr.rel (0) target = $region49
    $region48: #{tpu_custom_call.1} parent=1 // pred_region
      %77 = dma.done [#allocation5], 256
    $region49: #{tpu_custom_call.1} parent=1 // pred_fallthru
      _
    // Predicated region
    $region50: #{tpu_custom_call.1} parent=1 // pred_check
      _
    $region51: #{tpu_custom_call.1} parent=1 // pred_check_branch
      %79 = sbr.rel (0) target = $region53
    $region52: #{tpu_custom_call.1} parent=1 // pred_region
      %81 = dma.done [#allocation5], 256
    $region53: #{tpu_custom_call.1} parent=1 // pred_fallthru
      _
    %v82 = vld [vmem:[%s0] sm:$0xff]
    %v83 = vld [vmem:[%s0 + $0x8] sm:$0xff]
    %v84 = vld [vmem:[%s0 + $0x10] sm:$0xff]
    %v85 = vld [vmem:[%s0 + $0x18] sm:$0xff]
    %v86 = vld [vmem:[%s0 + $0x20] sm:$0xff]
    %v87 = vld [vmem:[%s0 + $0x28] sm:$0xff]
    %v88 = vld [vmem:[%s0 + $0x30] sm:$0xff]
    %v89 = vld [vmem:[%s0 + $0x38] sm:$0xff]
    %v90 = vld [vmem:[%s1] sm:$0xff]
    %v91 = vld [vmem:[%s1 + $0x8] sm:$0xff]
    %v92 = vld [vmem:[#allocation6] sm:$0x1]
    %v93 = vperm.slane %v92, 0
    %vm94 = vcmask 130048
    %v96 = vsel %vm94, %v82, 0
    %v99 = vsel %vm94, %v83, 0
    %v102 = vsel %vm94, %v84, 0
    %v105 = vsel %vm94, %v85, 0
    %v108 = vsel %vm94, %v86, 0
    %v111 = vsel %vm94, %v87, 0
    %v114 = vsel %vm94, %v88, 0
    %v117 = vsel %vm94, %v89, 0
    %119 = vmatpush.msra.mxu0 0.0
    %120 = vmatpush.msra.mxu0 0.0
    %121 = vmatpush.msra.mxu0 0.0
    %122 = vmatpush.msra.mxu0 0.0
    %123 = vmatpush.msra.mxu0 0.0
    %124 = vmatpush.msra.mxu0 0.0
    %125 = vmatpush.msra.mxu0 0.0
    %126 = vmatpush.msra.mxu0 0.0
    %127 = vmatpush.msra.mxu0 0.0
    %128 = vmatpush.msra.mxu0 0.0
    %129 = vmatpush.msra.mxu0 0.0
    %130 = vmatpush.msra.mxu0 0.0
    %131 = vmatpush.msra.mxu0 0.0
    %132 = vmatpush.msra.mxu0 0.0
    %133 = vmatpush.msra.mxu0 %v91
    %134 = vmatpush.msra.mxu0 %v90
    %135 = vmatmul.f32.gmra.mxu0 %v96
    %v136 = vpop.f32.mrf.mxu0
    %v137 = vadd.f32 %v93, %v136
    %138 = vmatmul.f32.gmra.mxu0 %v99
    %v139 = vpop.f32.mrf.mxu0
    %v140 = vadd.f32 %v93, %v139
    %141 = vmatmul.f32.gmra.mxu0 %v102
    %v142 = vpop.f32.mrf.mxu0
    %v143 = vadd.f32 %v93, %v142
    %144 = vmatmul.f32.gmra.mxu0 %v105
    %v145 = vpop.f32.mrf.mxu0
    %v146 = vadd.f32 %v93, %v145
    %147 = vmatmul.f32.gmra.mxu0 %v108
    %v148 = vpop.f32.mrf.mxu0
    %v149 = vadd.f32 %v93, %v148
    %150 = vmatmul.f32.gmra.mxu0 %v111
    %v151 = vpop.f32.mrf.mxu0
    %v152 = vadd.f32 %v93, %v151
    %153 = vmatmul.f32.gmra.mxu0 %v114
    %v154 = vpop.f32.mrf.mxu0
    %v155 = vadd.f32 %v93, %v154
    %156 = vmatmul.f32.gmra.mxu0 %v117
    %v157 = vpop.f32.mrf.mxu0
    %v158 = vadd.f32 %v93, %v157
    %159 = vdwg.mxu0
    %v160 = vmul.f32 %v137, 0.5
    %v161 = vmul.f32 %v140, 0.5
    %v162 = vmul.f32 %v143, 0.5
    %v163 = vmul.f32 %v146, 0.5
    %v164 = vmul.f32 %v149, 0.5
    %v165 = vmul.f32 %v152, 0.5
    %v166 = vmul.f32 %v155, 0.5
    %v167 = vmul.f32 %v158, 0.5
    %v168 = vmul.f32 %v137, 0.70710677
    %v169 = vmul.f32 %v140, 0.70710677
    %v170 = vmul.f32 %v143, 0.70710677
    %v171 = vmul.f32 %v146, 0.70710677
    %v172 = vmul.f32 %v149, 0.70710677
    %v173 = vmul.f32 %v152, 0.70710677
    %v174 = vmul.f32 %v155, 0.70710677
    %v175 = vmul.f32 %v158, 0.70710677
    %v176 = vand.u32 2147483647, %v168
    %v177 = vand.u32 2147483647, %v169
    %v178 = vand.u32 2147483647, %v170
    %v179 = vand.u32 2147483647, %v171
    %v180 = vand.u32 2147483647, %v172
    %v181 = vand.u32 2147483647, %v173
    %v182 = vand.u32 2147483647, %v174
    %v183 = vand.u32 2147483647, %v175
    %v184 = vmul.f32 %v176, 0.3275911
    %v185 = vmul.f32 %v177, 0.3275911
    %v186 = vmul.f32 %v178, 0.3275911
    %v187 = vmul.f32 %v179, 0.3275911
    %v188 = vmul.f32 %v180, 0.3275911
    %v189 = vmul.f32 %v181, 0.3275911
    %v190 = vmul.f32 %v182, 0.3275911
    %v191 = vmul.f32 %v183, 0.3275911
    %v192 = vadd.f32 %v184, 1.0
    %v193 = vadd.f32 %v185, 1.0
    %v194 = vadd.f32 %v186, 1.0
    %v195 = vadd.f32 %v187, 1.0
    %v196 = vadd.f32 %v188, 1.0
    %v197 = vadd.f32 %v189, 1.0
    %v198 = vadd.f32 %v190, 1.0
    %v199 = vadd.f32 %v191, 1.0
    %v200 = vrcp.pop %v192
    %v201 = vrcp.pop %v193
    %v202 = vrcp.pop %v194
    %v203 = vrcp.pop %v195
    %v204 = vrcp.pop %v196
    %v205 = vrcp.pop %v197
    %v206 = vrcp.pop %v198
    %v207 = vrcp.pop %v199
    %v208 = vmul.f32 %v200, 1.0614054
    %v209 = vmul.f32 %v201, 1.0614054
    %v210 = vmul.f32 %v202, 1.0614054
    %v211 = vmul.f32 %v203, 1.0614054
    %v212 = vmul.f32 %v204, 1.0614054
    %v213 = vmul.f32 %v205, 1.0614054
    %v214 = vmul.f32 %v206, 1.0614054
    %v215 = vmul.f32 %v207, 1.0614054
    %v216 = vadd.f32 %v208, -1.4531521
    %v217 = vadd.f32 %v209, -1.4531521
    %v218 = vadd.f32 %v210, -1.4531521
    %v219 = vadd.f32 %v211, -1.4531521
    %v220 = vadd.f32 %v212, -1.4531521
    %v221 = vadd.f32 %v213, -1.4531521
    %v222 = vadd.f32 %v214, -1.4531521
    %v223 = vadd.f32 %v215, -1.4531521
    %v224 = vmul.f32 %v216, %v200
    %v225 = vmul.f32 %v217, %v201
    %v226 = vmul.f32 %v218, %v202
    %v227 = vmul.f32 %v219, %v203
    %v228 = vmul.f32 %v220, %v204
    %v229 = vmul.f32 %v221, %v205
    %v230 = vmul.f32 %v222, %v206
    %v231 = vmul.f32 %v223, %v207
    %v232 = vadd.f32 %v224, 1.4214138
    %v233 = vadd.f32 %v225, 1.4214138
    %v234 = vadd.f32 %v226, 1.4214138
    %v235 = vadd.f32 %v227, 1.4214138
    %v236 = vadd.f32 %v228, 1.4214138
    %v237 = vadd.f32 %v229, 1.4214138
    %v238 = vadd.f32 %v230, 1.4214138
    %v239 = vadd.f32 %v231, 1.4214138
    %v240 = vmul.f32 %v232, %v200
    %v241 = vmul.f32 %v233, %v201
    %v242 = vmul.f32 %v234, %v202
    %v243 = vmul.f32 %v235, %v203
    %v244 = vmul.f32 %v236, %v204
    %v245 = vmul.f32 %v237, %v205
    %v246 = vmul.f32 %v238, %v206
    %v247 = vmul.f32 %v239, %v207
    %v248 = vadd.f32 %v240, -0.28449672
    %v249 = vadd.f32 %v241, -0.28449672
    %v250 = vadd.f32 %v242, -0.28449672
    %v251 = vadd.f32 %v243, -0.28449672
    %v252 = vadd.f32 %v244, -0.28449672
    %v253 = vadd.f32 %v245, -0.28449672
    %v254 = vadd.f32 %v246, -0.28449672
    %v255 = vadd.f32 %v247, -0.28449672
    %v256 = vmul.f32 %v248, %v200
    %v257 = vmul.f32 %v249, %v201
    %v258 = vmul.f32 %v250, %v202
    %v259 = vmul.f32 %v251, %v203
    %v260 = vmul.f32 %v252, %v204
    %v261 = vmul.f32 %v253, %v205
    %v262 = vmul.f32 %v254, %v206
    %v263 = vmul.f32 %v255, %v207
    %v264 = vadd.f32 %v256, 0.2548296
    %v265 = vadd.f32 %v257, 0.2548296
    %v266 = vadd.f32 %v258, 0.2548296
    %v267 = vadd.f32 %v259, 0.2548296
    %v268 = vadd.f32 %v260, 0.2548296
    %v269 = vadd.f32 %v261, 0.2548296
    %v270 = vadd.f32 %v262, 0.2548296
    %v271 = vadd.f32 %v263, 0.2548296
    %v272 = vmul.f32 %v264, %v200
    %v273 = vmul.f32 %v265, %v201
    %v274 = vmul.f32 %v266, %v202
    %v275 = vmul.f32 %v267, %v203
    %v276 = vmul.f32 %v268, %v204
    %v277 = vmul.f32 %v269, %v205
    %v278 = vmul.f32 %v270, %v206
    %v279 = vmul.f32 %v271, %v207
    %v280 = vsub.f32 0.0, %v176
    %v281 = vsub.f32 0.0, %v177
    %v282 = vsub.f32 0.0, %v178
    %v283 = vsub.f32 0.0, %v179
    %v284 = vsub.f32 0.0, %v180
    %v285 = vsub.f32 0.0, %v181
    %v286 = vsub.f32 0.0, %v182
    %v287 = vsub.f32 0.0, %v183
    %v288 = vmul.f32 %v280, %v176
    %v289 = vmul.f32 %v281, %v177
    %v290 = vmul.f32 %v282, %v178
    %v291 = vmul.f32 %v283, %v179
    %v292 = vmul.f32 %v284, %v180
    %v293 = vmul.f32 %v285, %v181
    %v294 = vmul.f32 %v286, %v182
    %v295 = vmul.f32 %v287, %v183
    %v296 = vmul.f32 %v288, 1.442695
    %v297 = vpow.pop %v296
    %v298 = vmul.f32 %v289, 1.442695
    %v299 = vpow.pop %v298
    %v300 = vmul.f32 %v290, 1.442695
    %v301 = vpow.pop %v300
    %v302 = vmul.f32 %v291, 1.442695
    %v303 = vpow.pop %v302
    %v304 = vmul.f32 %v292, 1.442695
    %v305 = vpow.pop %v304
    %v306 = vmul.f32 %v293, 1.442695
    %v307 = vpow.pop %v306
    %v308 = vmul.f32 %v294, 1.442695
    %v309 = vpow.pop %v308
    %v310 = vmul.f32 %v295, 1.442695
    %v311 = vpow.pop %v310
    %v312 = vmul.f32 %v272, %v297
    %v313 = vmul.f32 %v273, %v299
    %v314 = vmul.f32 %v274, %v301
    %v315 = vmul.f32 %v275, %v303
    %v316 = vmul.f32 %v276, %v305
    %v317 = vmul.f32 %v277, %v307
    %v318 = vmul.f32 %v278, %v309
    %v319 = vmul.f32 %v279, %v311
    %v320 = vsub.f32 1.0, %v312
    %v321 = vsub.f32 1.0, %v313
    %v322 = vsub.f32 1.0, %v314
    %v323 = vsub.f32 1.0, %v315
    %v324 = vsub.f32 1.0, %v316
    %v325 = vsub.f32 1.0, %v317
    %v326 = vsub.f32 1.0, %v318
    %v327 = vsub.f32 1.0, %v319
    %vm328 = vcmp.ge.f32.partialorder %v168, 0.0
    %vm329 = vcmp.ge.f32.partialorder %v169, 0.0
    %vm330 = vcmp.ge.f32.partialorder %v170, 0.0
    %vm331 = vcmp.ge.f32.partialorder %v171, 0.0
    %vm332 = vcmp.ge.f32.partialorder %v172, 0.0
    %vm333 = vcmp.ge.f32.partialorder %v173, 0.0
    %vm334 = vcmp.ge.f32.partialorder %v174, 0.0
    %vm335 = vcmp.ge.f32.partialorder %v175, 0.0
    %v336 = vsub.f32 0.0, %v320
    %v337 = vsub.f32 0.0, %v321
    %v338 = vsub.f32 0.0, %v322
    %v339 = vsub.f32 0.0, %v323
    %v340 = vsub.f32 0.0, %v324
    %v341 = vsub.f32 0.0, %v325
    %v342 = vsub.f32 0.0, %v326
    %v343 = vsub.f32 0.0, %v327
    %v344 = vsel %vm328, %v320, %v336
    %v345 = vsel %vm329, %v321, %v337
    %v346 = vsel %vm330, %v322, %v338
    %v347 = vsel %vm331, %v323, %v339
    %v348 = vsel %vm332, %v324, %v340
    %v349 = vsel %vm333, %v325, %v341
    %v350 = vsel %vm334, %v326, %v342
    %v351 = vsel %vm335, %v327, %v343
    %v352 = vadd.f32 %v344, 1.0
    %v353 = vadd.f32 %v345, 1.0
    %v354 = vadd.f32 %v346, 1.0
    %v355 = vadd.f32 %v347, 1.0
    %v356 = vadd.f32 %v348, 1.0
    %v357 = vadd.f32 %v349, 1.0
    %v358 = vadd.f32 %v350, 1.0
    %v359 = vadd.f32 %v351, 1.0
    %v360 = vmul.f32 %v160, %v352
    %v361 = vmul.f32 %v161, %v353
    %v362 = vmul.f32 %v162, %v354
    %v363 = vmul.f32 %v163, %v355
    %v364 = vmul.f32 %v164, %v356
    %v365 = vmul.f32 %v165, %v357
    %v366 = vmul.f32 %v166, %v358
    %v367 = vmul.f32 %v167, %v359
    %v368 = vld [vmem:[%s2] sm:$0xff]
    %v369 = vld [vmem:[%s2 + $0x8] sm:$0xff]
    %v370 = vld [vmem:[%s2 + $0x10] sm:$0xff]
    %v371 = vld [vmem:[%s2 + $0x18] sm:$0xff]
    %v372 = vld [vmem:[%s2 + $0x20] sm:$0xff]
    %v373 = vld [vmem:[%s2 + $0x28] sm:$0xff]
    %v374 = vld [vmem:[#allocation6 + $0x1] sm:$0x1]
    %v375 = vperm.slane %v374, 0
    %vm376 = vcmask 392192
    %v378 = vsel %vm376, %v360, 0
    %v381 = vsel %vm376, %v361, 0
    %v384 = vsel %vm376, %v362, 0
    %v387 = vsel %vm376, %v363, 0
    %v390 = vsel %vm376, %v364, 0
    %v393 = vsel %vm376, %v365, 0
    %v396 = vsel %vm376, %v366, 0
    %v399 = vsel %vm376, %v367, 0
    %401 = vmatpush.msra.mxu0 0.0
    %402 = vmatpush.msra.mxu0 0.0
    %403 = vmatpush.msra.mxu0 0.0
    %404 = vmatpush.msra.mxu0 0.0
    %405 = vmatpush.msra.mxu0 0.0
    %406 = vmatpush.msra.mxu0 0.0
    %407 = vmatpush.msra.mxu0 0.0
    %408 = vmatpush.msra.mxu0 0.0
    %409 = vmatpush.msra.mxu0 0.0
    %410 = vmatpush.msra.mxu0 0.0
    %411 = vmatpush.msra.mxu0 %v373
    %412 = vmatpush.msra.mxu0 %v372
    %413 = vmatpush.msra.mxu0 %v371
    %414 = vmatpush.msra.mxu0 %v370
    %415 = vmatpush.msra.mxu0 %v369
    %416 = vmatpush.msra.mxu0 %v368
    %417 = vmatmul.f32.gmra.mxu0 %v378
    %v418 = vpop.f32.mrf.mxu0
    %v419 = vadd.f32 %v375, %v418
    %420 = vmatmul.f32.gmra.mxu0 %v381
    %v421 = vpop.f32.mrf.mxu0
    %v422 = vadd.f32 %v375, %v421
    %423 = vmatmul.f32.gmra.mxu0 %v384
    %v424 = vpop.f32.mrf.mxu0
    %v425 = vadd.f32 %v375, %v424
    %426 = vmatmul.f32.gmra.mxu0 %v387
    %v427 = vpop.f32.mrf.mxu0
    %v428 = vadd.f32 %v375, %v427
    %429 = vmatmul.f32.gmra.mxu0 %v390
    %v430 = vpop.f32.mrf.mxu0
    %v431 = vadd.f32 %v375, %v430
    %432 = vmatmul.f32.gmra.mxu0 %v393
    %v433 = vpop.f32.mrf.mxu0
    %v434 = vadd.f32 %v375, %v433
    %435 = vmatmul.f32.gmra.mxu0 %v396
    %v436 = vpop.f32.mrf.mxu0
    %v437 = vadd.f32 %v375, %v436
    %438 = vmatmul.f32.gmra.mxu0 %v399
    %v439 = vpop.f32.mrf.mxu0
    %v440 = vadd.f32 %v375, %v439
    %441 = vdwg.mxu0
    %v442 = vmul.f32 %v419, 0.5
    %v443 = vmul.f32 %v422, 0.5
    %v444 = vmul.f32 %v425, 0.5
    %v445 = vmul.f32 %v428, 0.5
    %v446 = vmul.f32 %v431, 0.5
    %v447 = vmul.f32 %v434, 0.5
    %v448 = vmul.f32 %v437, 0.5
    %v449 = vmul.f32 %v440, 0.5
    %v450 = vmul.f32 %v419, 0.70710677
    %v451 = vmul.f32 %v422, 0.70710677
    %v452 = vmul.f32 %v425, 0.70710677
    %v453 = vmul.f32 %v428, 0.70710677
    %v454 = vmul.f32 %v431, 0.70710677
    %v455 = vmul.f32 %v434, 0.70710677
    %v456 = vmul.f32 %v437, 0.70710677
    %v457 = vmul.f32 %v440, 0.70710677
    %v458 = vand.u32 2147483647, %v450
    %v459 = vand.u32 2147483647, %v451
    %v460 = vand.u32 2147483647, %v452
    %v461 = vand.u32 2147483647, %v453
    %v462 = vand.u32 2147483647, %v454
    %v463 = vand.u32 2147483647, %v455
    %v464 = vand.u32 2147483647, %v456
    %v465 = vand.u32 2147483647, %v457
    %v466 = vmul.f32 %v458, 0.3275911
    %v467 = vmul.f32 %v459, 0.3275911
    %v468 = vmul.f32 %v460, 0.3275911
    %v469 = vmul.f32 %v461, 0.3275911
    %v470 = vmul.f32 %v462, 0.3275911
    %v471 = vmul.f32 %v463, 0.3275911
    %v472 = vmul.f32 %v464, 0.3275911
    %v473 = vmul.f32 %v465, 0.3275911
    %v474 = vadd.f32 %v466, 1.0
    %v475 = vadd.f32 %v467, 1.0
    %v476 = vadd.f32 %v468, 1.0
    %v477 = vadd.f32 %v469, 1.0
    %v478 = vadd.f32 %v470, 1.0
    %v479 = vadd.f32 %v471, 1.0
    %v480 = vadd.f32 %v472, 1.0
    %v481 = vadd.f32 %v473, 1.0
    %v482 = vrcp.pop %v474
    %v483 = vrcp.pop %v475
    %v484 = vrcp.pop %v476
    %v485 = vrcp.pop %v477
    %v486 = vrcp.pop %v478
    %v487 = vrcp.pop %v479
    %v488 = vrcp.pop %v480
    %v489 = vrcp.pop %v481
    %v490 = vmul.f32 %v482, 1.0614054
    %v491 = vmul.f32 %v483, 1.0614054
    %v492 = vmul.f32 %v484, 1.0614054
    %v493 = vmul.f32 %v485, 1.0614054
    %v494 = vmul.f32 %v486, 1.0614054
    %v495 = vmul.f32 %v487, 1.0614054
    %v496 = vmul.f32 %v488, 1.0614054
    %v497 = vmul.f32 %v489, 1.0614054
    %v498 = vadd.f32 %v490, -1.4531521
    %v499 = vadd.f32 %v491, -1.4531521
    %v500 = vadd.f32 %v492, -1.4531521
    %v501 = vadd.f32 %v493, -1.4531521
    %v502 = vadd.f32 %v494, -1.4531521
    %v503 = vadd.f32 %v495, -1.4531521
    %v504 = vadd.f32 %v496, -1.4531521
    %v505 = vadd.f32 %v497, -1.4531521
    %v506 = vmul.f32 %v498, %v482
    %v507 = vmul.f32 %v499, %v483
    %v508 = vmul.f32 %v500, %v484
    %v509 = vmul.f32 %v501, %v485
    %v510 = vmul.f32 %v502, %v486
    %v511 = vmul.f32 %v503, %v487
    %v512 = vmul.f32 %v504, %v488
    %v513 = vmul.f32 %v505, %v489
    %v514 = vadd.f32 %v506, 1.4214138
    %v515 = vadd.f32 %v507, 1.4214138
    %v516 = vadd.f32 %v508, 1.4214138
    %v517 = vadd.f32 %v509, 1.4214138
    %v518 = vadd.f32 %v510, 1.4214138
    %v519 = vadd.f32 %v511, 1.4214138
    %v520 = vadd.f32 %v512, 1.4214138
    %v521 = vadd.f32 %v513, 1.4214138
    %v522 = vmul.f32 %v514, %v482
    %v523 = vmul.f32 %v515, %v483
    %v524 = vmul.f32 %v516, %v484
    %v525 = vmul.f32 %v517, %v485
    %v526 = vmul.f32 %v518, %v486
    %v527 = vmul.f32 %v519, %v487
    %v528 = vmul.f32 %v520, %v488
    %v529 = vmul.f32 %v521, %v489
    %v530 = vadd.f32 %v522, -0.28449672
    %v531 = vadd.f32 %v523, -0.28449672
    %v532 = vadd.f32 %v524, -0.28449672
    %v533 = vadd.f32 %v525, -0.28449672
    %v534 = vadd.f32 %v526, -0.28449672
    %v535 = vadd.f32 %v527, -0.28449672
    %v536 = vadd.f32 %v528, -0.28449672
    %v537 = vadd.f32 %v529, -0.28449672
    %v538 = vmul.f32 %v530, %v482
    %v539 = vmul.f32 %v531, %v483
    %v540 = vmul.f32 %v532, %v484
    %v541 = vmul.f32 %v533, %v485
    %v542 = vmul.f32 %v534, %v486
    %v543 = vmul.f32 %v535, %v487
    %v544 = vmul.f32 %v536, %v488
    %v545 = vmul.f32 %v537, %v489
    %v546 = vadd.f32 %v538, 0.2548296
    %v547 = vadd.f32 %v539, 0.2548296
    %v548 = vadd.f32 %v540, 0.2548296
    %v549 = vadd.f32 %v541, 0.2548296
    %v550 = vadd.f32 %v542, 0.2548296
    %v551 = vadd.f32 %v543, 0.2548296
    %v552 = vadd.f32 %v544, 0.2548296
    %v553 = vadd.f32 %v545, 0.2548296
    %v554 = vmul.f32 %v546, %v482
    %v555 = vmul.f32 %v547, %v483
    %v556 = vmul.f32 %v548, %v484
    %v557 = vmul.f32 %v549, %v485
    %v558 = vmul.f32 %v550, %v486
    %v559 = vmul.f32 %v551, %v487
    %v560 = vmul.f32 %v552, %v488
    %v561 = vmul.f32 %v553, %v489
    %v562 = vsub.f32 0.0, %v458
    %v563 = vsub.f32 0.0, %v459
    %v564 = vsub.f32 0.0, %v460
    %v565 = vsub.f32 0.0, %v461
    %v566 = vsub.f32 0.0, %v462
    %v567 = vsub.f32 0.0, %v463
    %v568 = vsub.f32 0.0, %v464
    %v569 = vsub.f32 0.0, %v465
    %v570 = vmul.f32 %v562, %v458
    %v571 = vmul.f32 %v563, %v459
    %v572 = vmul.f32 %v564, %v460
    %v573 = vmul.f32 %v565, %v461
    %v574 = vmul.f32 %v566, %v462
    %v575 = vmul.f32 %v567, %v463
    %v576 = vmul.f32 %v568, %v464
    %v577 = vmul.f32 %v569, %v465
    %v578 = vmul.f32 %v570, 1.442695
    %v579 = vpow.pop %v578
    %v580 = vmul.f32 %v571, 1.442695
    %v581 = vpow.pop %v580
    %v582 = vmul.f32 %v572, 1.442695
    %v583 = vpow.pop %v582
    %v584 = vmul.f32 %v573, 1.442695
    %v585 = vpow.pop %v584
    %v586 = vmul.f32 %v574, 1.442695
    %v587 = vpow.pop %v586
    %v588 = vmul.f32 %v575, 1.442695
    %v589 = vpow.pop %v588
    %v590 = vmul.f32 %v576, 1.442695
    %v591 = vpow.pop %v590
    %v592 = vmul.f32 %v577, 1.442695
    %v593 = vpow.pop %v592
    %v594 = vmul.f32 %v554, %v579
    %v595 = vmul.f32 %v555, %v581
    %v596 = vmul.f32 %v556, %v583
    %v597 = vmul.f32 %v557, %v585
    %v598 = vmul.f32 %v558, %v587
    %v599 = vmul.f32 %v559, %v589
    %v600 = vmul.f32 %v560, %v591
    %v601 = vmul.f32 %v561, %v593
    %v602 = vsub.f32 1.0, %v594
    %v603 = vsub.f32 1.0, %v595
    %v604 = vsub.f32 1.0, %v596
    %v605 = vsub.f32 1.0, %v597
    %v606 = vsub.f32 1.0, %v598
    %v607 = vsub.f32 1.0, %v599
    %v608 = vsub.f32 1.0, %v600
    %v609 = vsub.f32 1.0, %v601
    %vm610 = vcmp.ge.f32.partialorder %v450, 0.0
    %vm611 = vcmp.ge.f32.partialorder %v451, 0.0
    %vm612 = vcmp.ge.f32.partialorder %v452, 0.0
    %vm613 = vcmp.ge.f32.partialorder %v453, 0.0
    %vm614 = vcmp.ge.f32.partialorder %v454, 0.0
    %vm615 = vcmp.ge.f32.partialorder %v455, 0.0
    %vm616 = vcmp.ge.f32.partialorder %v456, 0.0
    %vm617 = vcmp.ge.f32.partialorder %v457, 0.0
    %v618 = vsub.f32 0.0, %v602
    %v619 = vsub.f32 0.0, %v603
    %v620 = vsub.f32 0.0, %v604
    %v621 = vsub.f32 0.0, %v605
    %v622 = vsub.f32 0.0, %v606
    %v623 = vsub.f32 0.0, %v607
    %v624 = vsub.f32 0.0, %v608
    %v625 = vsub.f32 0.0, %v609
    %v626 = vsel %vm610, %v602, %v618
    %v627 = vsel %vm611, %v603, %v619
    %v628 = vsel %vm612, %v604, %v620
    %v629 = vsel %vm613, %v605, %v621
    %v630 = vsel %vm614, %v606, %v622
    %v631 = vsel %vm615, %v607, %v623
    %v632 = vsel %vm616, %v608, %v624
    %v633 = vsel %vm617, %v609, %v625
    %v634 = vadd.f32 %v626, 1.0
    %v635 = vadd.f32 %v627, 1.0
    %v636 = vadd.f32 %v628, 1.0
    %v637 = vadd.f32 %v629, 1.0
    %v638 = vadd.f32 %v630, 1.0
    %v639 = vadd.f32 %v631, 1.0
    %v640 = vadd.f32 %v632, 1.0
    %v641 = vadd.f32 %v633, 1.0
    %v642 = vmul.f32 %v442, %v634
    %v643 = vmul.f32 %v443, %v635
    %v644 = vmul.f32 %v444, %v636
    %v645 = vmul.f32 %v445, %v637
    %v646 = vmul.f32 %v446, %v638
    %v647 = vmul.f32 %v447, %v639
    %v648 = vmul.f32 %v448, %v640
    %v649 = vmul.f32 %v449, %v641
    %v650 = vld [vmem:[%s3] sm:$0xff]
    %v651 = vld [vmem:[%s3 + $0x8] sm:$0xff]
    %v652 = vld [vmem:[%s3 + $0x10] sm:$0xff]
    %v653 = vld [vmem:[%s3 + $0x18] sm:$0xff]
    %v654 = vld [vmem:[%s3 + $0x20] sm:$0xff]
    %v655 = vld [vmem:[%s3 + $0x28] sm:$0xff]
    %v656 = vld [vmem:[#allocation6 + $0x2] sm:$0x1]
    %v657 = vperm.slane %v656, 0
    %v659 = vsel %vm376, %v642, 0
    %v662 = vsel %vm376, %v643, 0
    %v665 = vsel %vm376, %v644, 0
    %v668 = vsel %vm376, %v645, 0
    %v671 = vsel %vm376, %v646, 0
    %v674 = vsel %vm376, %v647, 0
    %v677 = vsel %vm376, %v648, 0
    %v680 = vsel %vm376, %v649, 0
    %682 = vmatpush.msra.mxu0 0.0
    %683 = vmatpush.msra.mxu0 0.0
    %684 = vmatpush.msra.mxu0 0.0
    %685 = vmatpush.msra.mxu0 0.0
    %686 = vmatpush.msra.mxu0 0.0
    %687 = vmatpush.msra.mxu0 0.0
    %688 = vmatpush.msra.mxu0 0.0
    %689 = vmatpush.msra.mxu0 0.0
    %690 = vmatpush.msra.mxu0 0.0
    %691 = vmatpush.msra.mxu0 0.0
    %692 = vmatpush.msra.mxu0 %v655
    %693 = vmatpush.msra.mxu0 %v654
    %694 = vmatpush.msra.mxu0 %v653
    %695 = vmatpush.msra.mxu0 %v652
    %696 = vmatpush.msra.mxu0 %v651
    %697 = vmatpush.msra.mxu0 %v650
    %698 = vmatmul.f32.gmra.mxu0 %v659
    %v699 = vpop.f32.mrf.mxu0
    %v700 = vadd.f32 %v657, %v699
    %701 = vmatmul.f32.gmra.mxu0 %v662
    %v702 = vpop.f32.mrf.mxu0
    %v703 = vadd.f32 %v657, %v702
    %704 = vmatmul.f32.gmra.mxu0 %v665
    %v705 = vpop.f32.mrf.mxu0
    %v706 = vadd.f32 %v657, %v705
    %707 = vmatmul.f32.gmra.mxu0 %v668
    %v708 = vpop.f32.mrf.mxu0
    %v709 = vadd.f32 %v657, %v708
    %710 = vmatmul.f32.gmra.mxu0 %v671
    %v711 = vpop.f32.mrf.mxu0
    %v712 = vadd.f32 %v657, %v711
    %713 = vmatmul.f32.gmra.mxu0 %v674
    %v714 = vpop.f32.mrf.mxu0
    %v715 = vadd.f32 %v657, %v714
    %716 = vmatmul.f32.gmra.mxu0 %v677
    %v717 = vpop.f32.mrf.mxu0
    %v718 = vadd.f32 %v657, %v717
    %719 = vmatmul.f32.gmra.mxu0 %v680
    %v720 = vpop.f32.mrf.mxu0
    %v721 = vadd.f32 %v657, %v720
    %722 = vdwg.mxu0
    %v723 = vld [vmem:[#allocation2] sm:$0xff]
    %v724 = vld [vmem:[#allocation2 + $0x8] sm:$0xff]
    %v725 = vld [vmem:[#allocation4] sm:$0xff]
    %v726 = vld [vmem:[#allocation4 + $0x8] sm:$0xff]
    %v728 = vsel %vm94, %v700, 0
    %v731 = vsel %vm94, %v703, 0
    %v734 = vsel %vm94, %v706, 0
    %v737 = vsel %vm94, %v709, 0
    %v740 = vsel %vm94, %v712, 0
    %v743 = vsel %vm94, %v715, 0
    %v746 = vsel %vm94, %v718, 0
    %v749 = vsel %vm94, %v721, 0
    %751 = vmatpush.msra.mxu0 0.0
    %752 = vmatpush.msra.mxu0 0.0
    %753 = vmatpush.msra.mxu0 0.0
    %754 = vmatpush.msra.mxu0 0.0
    %755 = vmatpush.msra.mxu0 0.0
    %756 = vmatpush.msra.mxu0 0.0
    %757 = vmatpush.msra.mxu0 0.0
    %758 = vmatpush.msra.mxu0 0.0
    %759 = vmatpush.msra.mxu0 0.0
    %760 = vmatpush.msra.mxu0 0.0
    %761 = vmatpush.msra.mxu0 0.0
    %762 = vmatpush.msra.mxu0 0.0
    %763 = vmatpush.msra.mxu0 0.0
    %764 = vmatpush.msra.mxu0 0.0
    %765 = vmatpush.msra.mxu0 %v726
    %766 = vmatpush.msra.mxu0 %v725
    %767 = vmatmul.f32.gmra.mxu0 %v728
    %v768 = vpop.f32.mrf.mxu0
    %v769 = vadd.f32 0.0, %v768
    %770 = vmatmul.f32.gmra.mxu0 %v731
    %v771 = vpop.f32.mrf.mxu0
    %v772 = vadd.f32 0.0, %v771
    %773 = vmatmul.f32.gmra.mxu0 %v734
    %v774 = vpop.f32.mrf.mxu0
    %v775 = vadd.f32 0.0, %v774
    %776 = vmatmul.f32.gmra.mxu0 %v737
    %v777 = vpop.f32.mrf.mxu0
    %v778 = vadd.f32 0.0, %v777
    %779 = vmatmul.f32.gmra.mxu0 %v740
    %v780 = vpop.f32.mrf.mxu0
    %v781 = vadd.f32 0.0, %v780
    %782 = vmatmul.f32.gmra.mxu0 %v743
    %v783 = vpop.f32.mrf.mxu0
    %v784 = vadd.f32 0.0, %v783
    %785 = vmatmul.f32.gmra.mxu0 %v746
    %v786 = vpop.f32.mrf.mxu0
    %v787 = vadd.f32 0.0, %v786
    %788 = vmatmul.f32.gmra.mxu0 %v749
    %v789 = vpop.f32.mrf.mxu0
    %v790 = vadd.f32 0.0, %v789
    %791 = vdwg.mxu0
    %792 = vmatpush.msra.mxu0 0.0
    %793 = vmatpush.msra.mxu0 0.0
    %794 = vmatpush.msra.mxu0 0.0
    %795 = vmatpush.msra.mxu0 0.0
    %796 = vmatpush.msra.mxu0 0.0
    %797 = vmatpush.msra.mxu0 0.0
    %798 = vmatpush.msra.mxu0 0.0
    %799 = vmatpush.msra.mxu0 0.0
    %800 = vmatpush.msra.mxu0 0.0
    %801 = vmatpush.msra.mxu0 0.0
    %802 = vmatpush.msra.mxu0 0.0
    %803 = vmatpush.msra.mxu0 0.0
    %804 = vmatpush.msra.mxu0 0.0
    %805 = vmatpush.msra.mxu0 0.0
    %806 = vmatpush.msra.mxu0 %v724
    %807 = vmatpush.msra.mxu0 %v723
    %808 = vmatmul.f32.gmra.mxu0 %v96
    %v809 = vpop.f32.mrf.mxu0
    %v810 = vadd.f32 %v769, %v809
    %811 = vmatmul.f32.gmra.mxu0 %v99
    %v812 = vpop.f32.mrf.mxu0
    %v813 = vadd.f32 %v772, %v812
    %814 = vmatmul.f32.gmra.mxu0 %v102
    %v815 = vpop.f32.mrf.mxu0
    %v816 = vadd.f32 %v775, %v815
    %817 = vmatmul.f32.gmra.mxu0 %v105
    %v818 = vpop.f32.mrf.mxu0
    %v819 = vadd.f32 %v778, %v818
    %820 = vmatmul.f32.gmra.mxu0 %v108
    %v821 = vpop.f32.mrf.mxu0
    %v822 = vadd.f32 %v781, %v821
    %823 = vmatmul.f32.gmra.mxu0 %v111
    %v824 = vpop.f32.mrf.mxu0
    %v825 = vadd.f32 %v784, %v824
    %826 = vmatmul.f32.gmra.mxu0 %v114
    %v827 = vpop.f32.mrf.mxu0
    %v828 = vadd.f32 %v787, %v827
    %829 = vmatmul.f32.gmra.mxu0 %v117
    %v830 = vpop.f32.mrf.mxu0
    %v831 = vadd.f32 %v790, %v830
    %832 = vdwg.mxu0
    %v833 = vld [vmem:[#allocation6 + $0x3] sm:$0x1]
    %v834 = vperm.slane %v833, 0
    %v835 = vadd.f32 %v810, %v834
    %v836 = vadd.f32 %v813, %v834
    %v837 = vadd.f32 %v816, %v834
    %v838 = vadd.f32 %v819, %v834
    %v839 = vadd.f32 %v822, %v834
    %v840 = vadd.f32 %v825, %v834
    %v841 = vadd.f32 %v828, %v834
    %v842 = vadd.f32 %v831, %v834
    %v843 = vmul.f32 %v835, 0.5
    %v844 = vmul.f32 %v836, 0.5
    %v845 = vmul.f32 %v837, 0.5
    %v846 = vmul.f32 %v838, 0.5
    %v847 = vmul.f32 %v839, 0.5
    %v848 = vmul.f32 %v840, 0.5
    %v849 = vmul.f32 %v841, 0.5
    %v850 = vmul.f32 %v842, 0.5
    %v851 = vmul.f32 %v835, 0.70710677
    %v852 = vmul.f32 %v836, 0.70710677
    %v853 = vmul.f32 %v837, 0.70710677
    %v854 = vmul.f32 %v838, 0.70710677
    %v855 = vmul.f32 %v839, 0.70710677
    %v856 = vmul.f32 %v840, 0.70710677
    %v857 = vmul.f32 %v841, 0.70710677
    %v858 = vmul.f32 %v842, 0.70710677
    %v859 = vand.u32 2147483647, %v851
    %v860 = vand.u32 2147483647, %v852
    %v861 = vand.u32 2147483647, %v853
    %v862 = vand.u32 2147483647, %v854
    %v863 = vand.u32 2147483647, %v855
    %v864 = vand.u32 2147483647, %v856
    %v865 = vand.u32 2147483647, %v857
    %v866 = vand.u32 2147483647, %v858
    %v867 = vmul.f32 %v859, 0.3275911
    %v868 = vmul.f32 %v860, 0.3275911
    %v869 = vmul.f32 %v861, 0.3275911
    %v870 = vmul.f32 %v862, 0.3275911
    %v871 = vmul.f32 %v863, 0.3275911
    %v872 = vmul.f32 %v864, 0.3275911
    %v873 = vmul.f32 %v865, 0.3275911
    %v874 = vmul.f32 %v866, 0.3275911
    %v875 = vadd.f32 %v867, 1.0
    %v876 = vadd.f32 %v868, 1.0
    %v877 = vadd.f32 %v869, 1.0
    %v878 = vadd.f32 %v870, 1.0
    %v879 = vadd.f32 %v871, 1.0
    %v880 = vadd.f32 %v872, 1.0
    %v881 = vadd.f32 %v873, 1.0
    %v882 = vadd.f32 %v874, 1.0
    %v883 = vrcp.pop %v875
    %v884 = vrcp.pop %v876
    %v885 = vrcp.pop %v877
    %v886 = vrcp.pop %v878
    %v887 = vrcp.pop %v879
    %v888 = vrcp.pop %v880
    %v889 = vrcp.pop %v881
    %v890 = vrcp.pop %v882
    %v891 = vmul.f32 %v883, 1.0614054
    %v892 = vmul.f32 %v884, 1.0614054
    %v893 = vmul.f32 %v885, 1.0614054
    %v894 = vmul.f32 %v886, 1.0614054
    %v895 = vmul.f32 %v887, 1.0614054
    %v896 = vmul.f32 %v888, 1.0614054
    %v897 = vmul.f32 %v889, 1.0614054
    %v898 = vmul.f32 %v890, 1.0614054
    %v899 = vadd.f32 %v891, -1.4531521
    %v900 = vadd.f32 %v892, -1.4531521
    %v901 = vadd.f32 %v893, -1.4531521
    %v902 = vadd.f32 %v894, -1.4531521
    %v903 = vadd.f32 %v895, -1.4531521
    %v904 = vadd.f32 %v896, -1.4531521
    %v905 = vadd.f32 %v897, -1.4531521
    %v906 = vadd.f32 %v898, -1.4531521
    %v907 = vmul.f32 %v899, %v883
    %v908 = vmul.f32 %v900, %v884
    %v909 = vmul.f32 %v901, %v885
    %v910 = vmul.f32 %v902, %v886
    %v911 = vmul.f32 %v903, %v887
    %v912 = vmul.f32 %v904, %v888
    %v913 = vmul.f32 %v905, %v889
    %v914 = vmul.f32 %v906, %v890
    %v915 = vadd.f32 %v907, 1.4214138
    %v916 = vadd.f32 %v908, 1.4214138
    %v917 = vadd.f32 %v909, 1.4214138
    %v918 = vadd.f32 %v910, 1.4214138
    %v919 = vadd.f32 %v911, 1.4214138
    %v920 = vadd.f32 %v912, 1.4214138
    %v921 = vadd.f32 %v913, 1.4214138
    %v922 = vadd.f32 %v914, 1.4214138
    %v923 = vmul.f32 %v915, %v883
    %v924 = vmul.f32 %v916, %v884
    %v925 = vmul.f32 %v917, %v885
    %v926 = vmul.f32 %v918, %v886
    %v927 = vmul.f32 %v919, %v887
    %v928 = vmul.f32 %v920, %v888
    %v929 = vmul.f32 %v921, %v889
    %v930 = vmul.f32 %v922, %v890
    %v931 = vadd.f32 %v923, -0.28449672
    %v932 = vadd.f32 %v924, -0.28449672
    %v933 = vadd.f32 %v925, -0.28449672
    %v934 = vadd.f32 %v926, -0.28449672
    %v935 = vadd.f32 %v927, -0.28449672
    %v936 = vadd.f32 %v928, -0.28449672
    %v937 = vadd.f32 %v929, -0.28449672
    %v938 = vadd.f32 %v930, -0.28449672
    %v939 = vmul.f32 %v931, %v883
    %v940 = vmul.f32 %v932, %v884
    %v941 = vmul.f32 %v933, %v885
    %v942 = vmul.f32 %v934, %v886
    %v943 = vmul.f32 %v935, %v887
    %v944 = vmul.f32 %v936, %v888
    %v945 = vmul.f32 %v937, %v889
    %v946 = vmul.f32 %v938, %v890
    %v947 = vadd.f32 %v939, 0.2548296
    %v948 = vadd.f32 %v940, 0.2548296
    %v949 = vadd.f32 %v941, 0.2548296
    %v950 = vadd.f32 %v942, 0.2548296
    %v951 = vadd.f32 %v943, 0.2548296
    %v952 = vadd.f32 %v944, 0.2548296
    %v953 = vadd.f32 %v945, 0.2548296
    %v954 = vadd.f32 %v946, 0.2548296
    %v955 = vmul.f32 %v947, %v883
    %v956 = vmul.f32 %v948, %v884
    %v957 = vmul.f32 %v949, %v885
    %v958 = vmul.f32 %v950, %v886
    %v959 = vmul.f32 %v951, %v887
    %v960 = vmul.f32 %v952, %v888
    %v961 = vmul.f32 %v953, %v889
    %v962 = vmul.f32 %v954, %v890
    %v963 = vsub.f32 0.0, %v859
    %v964 = vsub.f32 0.0, %v860
    %v965 = vsub.f32 0.0, %v861
    %v966 = vsub.f32 0.0, %v862
    %v967 = vsub.f32 0.0, %v863
    %v968 = vsub.f32 0.0, %v864
    %v969 = vsub.f32 0.0, %v865
    %v970 = vsub.f32 0.0, %v866
    %v971 = vmul.f32 %v963, %v859
    %v972 = vmul.f32 %v964, %v860
    %v973 = vmul.f32 %v965, %v861
    %v974 = vmul.f32 %v966, %v862
    %v975 = vmul.f32 %v967, %v863
    %v976 = vmul.f32 %v968, %v864
    %v977 = vmul.f32 %v969, %v865
    %v978 = vmul.f32 %v970, %v866
    %v979 = vmul.f32 %v971, 1.442695
    %v980 = vpow.pop %v979
    %v981 = vmul.f32 %v972, 1.442695
    %v982 = vpow.pop %v981
    %v983 = vmul.f32 %v973, 1.442695
    %v984 = vpow.pop %v983
    %v985 = vmul.f32 %v974, 1.442695
    %v986 = vpow.pop %v985
    %v987 = vmul.f32 %v975, 1.442695
    %v988 = vpow.pop %v987
    %v989 = vmul.f32 %v976, 1.442695
    %v990 = vpow.pop %v989
    %v991 = vmul.f32 %v977, 1.442695
    %v992 = vpow.pop %v991
    %v993 = vmul.f32 %v978, 1.442695
    %v994 = vpow.pop %v993
    %v995 = vmul.f32 %v955, %v980
    %v996 = vmul.f32 %v956, %v982
    %v997 = vmul.f32 %v957, %v984
    %v998 = vmul.f32 %v958, %v986
    %v999 = vmul.f32 %v959, %v988
    %v1000 = vmul.f32 %v960, %v990
    %v1001 = vmul.f32 %v961, %v992
    %v1002 = vmul.f32 %v962, %v994
    %v1003 = vsub.f32 1.0, %v995
    %v1004 = vsub.f32 1.0, %v996
    %v1005 = vsub.f32 1.0, %v997
    %v1006 = vsub.f32 1.0, %v998
    %v1007 = vsub.f32 1.0, %v999
    %v1008 = vsub.f32 1.0, %v1000
    %v1009 = vsub.f32 1.0, %v1001
    %v1010 = vsub.f32 1.0, %v1002
    %vm1011 = vcmp.ge.f32.partialorder %v851, 0.0
    %vm1012 = vcmp.ge.f32.partialorder %v852, 0.0
    %vm1013 = vcmp.ge.f32.partialorder %v853, 0.0
    %vm1014 = vcmp.ge.f32.partialorder %v854, 0.0
    %vm1015 = vcmp.ge.f32.partialorder %v855, 0.0
    %vm1016 = vcmp.ge.f32.partialorder %v856, 0.0
    %vm1017 = vcmp.ge.f32.partialorder %v857, 0.0
    %vm1018 = vcmp.ge.f32.partialorder %v858, 0.0
    %v1019 = vsub.f32 0.0, %v1003
    %v1020 = vsub.f32 0.0, %v1004
    %v1021 = vsub.f32 0.0, %v1005
    %v1022 = vsub.f32 0.0, %v1006
    %v1023 = vsub.f32 0.0, %v1007
    %v1024 = vsub.f32 0.0, %v1008
    %v1025 = vsub.f32 0.0, %v1009
    %v1026 = vsub.f32 0.0, %v1010
    %v1027 = vsel %vm1011, %v1003, %v1019
    %v1028 = vsel %vm1012, %v1004, %v1020
    %v1029 = vsel %vm1013, %v1005, %v1021
    %v1030 = vsel %vm1014, %v1006, %v1022
    %v1031 = vsel %vm1015, %v1007, %v1023
    %v1032 = vsel %vm1016, %v1008, %v1024
    %v1033 = vsel %vm1017, %v1009, %v1025
    %v1034 = vsel %vm1018, %v1010, %v1026
    %v1035 = vadd.f32 %v1027, 1.0
    %v1036 = vadd.f32 %v1028, 1.0
    %v1037 = vadd.f32 %v1029, 1.0
    %v1038 = vadd.f32 %v1030, 1.0
    %v1039 = vadd.f32 %v1031, 1.0
    %v1040 = vadd.f32 %v1032, 1.0
    %v1041 = vadd.f32 %v1033, 1.0
    %v1042 = vadd.f32 %v1034, 1.0
    %v1043 = vmul.f32 %v843, %v1035
    %v1044 = vmul.f32 %v844, %v1036
    %v1045 = vmul.f32 %v845, %v1037
    %v1046 = vmul.f32 %v846, %v1038
    %v1047 = vmul.f32 %v847, %v1039
    %v1048 = vmul.f32 %v848, %v1040
    %v1049 = vmul.f32 %v849, %v1041
    %v1050 = vmul.f32 %v850, %v1042
    %v1051 = vld [vmem:[%s6] sm:$0xff]
    %v1052 = vld [vmem:[%s6 + $0x8] sm:$0xff]
    %v1053 = vld [vmem:[%s6 + $0x10] sm:$0xff]
    %v1054 = vld [vmem:[%s6 + $0x18] sm:$0xff]
    %v1055 = vld [vmem:[%s6 + $0x20] sm:$0xff]
    %v1056 = vld [vmem:[%s6 + $0x28] sm:$0xff]
    %v1057 = vld [vmem:[%s6 + $0x30] sm:$0xff]
    %v1058 = vld [vmem:[%s6 + $0x38] sm:$0xff]
    %v1059 = vld [vmem:[#allocation6 + $0x4] sm:$0x1]
    %v1060 = vperm.slane %v1059, 0
    %vm1061 = vcmask 523264
    %v1063 = vsel %vm1061, %v1043, 0
    %v1066 = vsel %vm1061, %v1044, 0
    %v1069 = vsel %vm1061, %v1045, 0
    %v1072 = vsel %vm1061, %v1046, 0
    %v1075 = vsel %vm1061, %v1047, 0
    %v1078 = vsel %vm1061, %v1048, 0
    %v1081 = vsel %vm1061, %v1049, 0
    %v1084 = vsel %vm1061, %v1050, 0
    %1086 = vmatpush.msra.mxu0 0.0
    %1087 = vmatpush.msra.mxu0 0.0
    %1088 = vmatpush.msra.mxu0 0.0
    %1089 = vmatpush.msra.mxu0 0.0
    %1090 = vmatpush.msra.mxu0 0.0
    %1091 = vmatpush.msra.mxu0 0.0
    %1092 = vmatpush.msra.mxu0 0.0
    %1093 = vmatpush.msra.mxu0 0.0
    %1094 = vmatpush.msra.mxu0 %v1058
    %1095 = vmatpush.msra.mxu0 %v1057
    %1096 = vmatpush.msra.mxu0 %v1056
    %1097 = vmatpush.msra.mxu0 %v1055
    %1098 = vmatpush.msra.mxu0 %v1054
    %1099 = vmatpush.msra.mxu0 %v1053
    %1100 = vmatpush.msra.mxu0 %v1052
    %1101 = vmatpush.msra.mxu0 %v1051
    %1102 = vmatmul.f32.gmra.mxu0 %v1063
    %v1103 = vpop.f32.mrf.mxu0
    %v1104 = vadd.f32 %v1060, %v1103
    %1105 = vmatmul.f32.gmra.mxu0 %v1066
    %v1106 = vpop.f32.mrf.mxu0
    %v1107 = vadd.f32 %v1060, %v1106
    %1108 = vmatmul.f32.gmra.mxu0 %v1069
    %v1109 = vpop.f32.mrf.mxu0
    %v1110 = vadd.f32 %v1060, %v1109
    %1111 = vmatmul.f32.gmra.mxu0 %v1072
    %v1112 = vpop.f32.mrf.mxu0
    %v1113 = vadd.f32 %v1060, %v1112
    %1114 = vmatmul.f32.gmra.mxu0 %v1075
    %v1115 = vpop.f32.mrf.mxu0
    %v1116 = vadd.f32 %v1060, %v1115
    %1117 = vmatmul.f32.gmra.mxu0 %v1078
    %v1118 = vpop.f32.mrf.mxu0
    %v1119 = vadd.f32 %v1060, %v1118
    %1120 = vmatmul.f32.gmra.mxu0 %v1081
    %v1121 = vpop.f32.mrf.mxu0
    %v1122 = vadd.f32 %v1060, %v1121
    %1123 = vmatmul.f32.gmra.mxu0 %v1084
    %v1124 = vpop.f32.mrf.mxu0
    %v1125 = vadd.f32 %v1060, %v1124
    %1126 = vdwg.mxu0
    %v1127 = vmul.f32 %v1104, 0.5
    %v1128 = vmul.f32 %v1107, 0.5
    %v1129 = vmul.f32 %v1110, 0.5
    %v1130 = vmul.f32 %v1113, 0.5
    %v1131 = vmul.f32 %v1116, 0.5
    %v1132 = vmul.f32 %v1119, 0.5
    %v1133 = vmul.f32 %v1122, 0.5
    %v1134 = vmul.f32 %v1125, 0.5
    %v1135 = vmul.f32 %v1104, 0.70710677
    %v1136 = vmul.f32 %v1107, 0.70710677
    %v1137 = vmul.f32 %v1110, 0.70710677
    %v1138 = vmul.f32 %v1113, 0.70710677
    %v1139 = vmul.f32 %v1116, 0.70710677
    %v1140 = vmul.f32 %v1119, 0.70710677
    %v1141 = vmul.f32 %v1122, 0.70710677
    %v1142 = vmul.f32 %v1125, 0.70710677
    %v1143 = vand.u32 2147483647, %v1135
    %v1144 = vand.u32 2147483647, %v1136
    %v1145 = vand.u32 2147483647, %v1137
    %v1146 = vand.u32 2147483647, %v1138
    %v1147 = vand.u32 2147483647, %v1139
    %v1148 = vand.u32 2147483647, %v1140
    %v1149 = vand.u32 2147483647, %v1141
    %v1150 = vand.u32 2147483647, %v1142
    %v1151 = vmul.f32 %v1143, 0.3275911
    %v1152 = vmul.f32 %v1144, 0.3275911
    %v1153 = vmul.f32 %v1145, 0.3275911
    %v1154 = vmul.f32 %v1146, 0.3275911
    %v1155 = vmul.f32 %v1147, 0.3275911
    %v1156 = vmul.f32 %v1148, 0.3275911
    %v1157 = vmul.f32 %v1149, 0.3275911
    %v1158 = vmul.f32 %v1150, 0.3275911
    %v1159 = vadd.f32 %v1151, 1.0
    %v1160 = vadd.f32 %v1152, 1.0
    %v1161 = vadd.f32 %v1153, 1.0
    %v1162 = vadd.f32 %v1154, 1.0
    %v1163 = vadd.f32 %v1155, 1.0
    %v1164 = vadd.f32 %v1156, 1.0
    %v1165 = vadd.f32 %v1157, 1.0
    %v1166 = vadd.f32 %v1158, 1.0
    %v1167 = vrcp.pop %v1159
    %v1168 = vrcp.pop %v1160
    %v1169 = vrcp.pop %v1161
    %v1170 = vrcp.pop %v1162
    %v1171 = vrcp.pop %v1163
    %v1172 = vrcp.pop %v1164
    %v1173 = vrcp.pop %v1165
    %v1174 = vrcp.pop %v1166
    %v1175 = vmul.f32 %v1167, 1.0614054
    %v1176 = vmul.f32 %v1168, 1.0614054
    %v1177 = vmul.f32 %v1169, 1.0614054
    %v1178 = vmul.f32 %v1170, 1.0614054
    %v1179 = vmul.f32 %v1171, 1.0614054
    %v1180 = vmul.f32 %v1172, 1.0614054
    %v1181 = vmul.f32 %v1173, 1.0614054
    %v1182 = vmul.f32 %v1174, 1.0614054
    %v1183 = vadd.f32 %v1175, -1.4531521
    %v1184 = vadd.f32 %v1176, -1.4531521
    %v1185 = vadd.f32 %v1177, -1.4531521
    %v1186 = vadd.f32 %v1178, -1.4531521
    %v1187 = vadd.f32 %v1179, -1.4531521
    %v1188 = vadd.f32 %v1180, -1.4531521
    %v1189 = vadd.f32 %v1181, -1.4531521
    %v1190 = vadd.f32 %v1182, -1.4531521
    %v1191 = vmul.f32 %v1183, %v1167
    %v1192 = vmul.f32 %v1184, %v1168
    %v1193 = vmul.f32 %v1185, %v1169
    %v1194 = vmul.f32 %v1186, %v1170
    %v1195 = vmul.f32 %v1187, %v1171
    %v1196 = vmul.f32 %v1188, %v1172
    %v1197 = vmul.f32 %v1189, %v1173
    %v1198 = vmul.f32 %v1190, %v1174
    %v1199 = vadd.f32 %v1191, 1.4214138
    %v1200 = vadd.f32 %v1192, 1.4214138
    %v1201 = vadd.f32 %v1193, 1.4214138
    %v1202 = vadd.f32 %v1194, 1.4214138
    %v1203 = vadd.f32 %v1195, 1.4214138
    %v1204 = vadd.f32 %v1196, 1.4214138
    %v1205 = vadd.f32 %v1197, 1.4214138
    %v1206 = vadd.f32 %v1198, 1.4214138
    %v1207 = vmul.f32 %v1199, %v1167
    %v1208 = vmul.f32 %v1200, %v1168
    %v1209 = vmul.f32 %v1201, %v1169
    %v1210 = vmul.f32 %v1202, %v1170
    %v1211 = vmul.f32 %v1203, %v1171
    %v1212 = vmul.f32 %v1204, %v1172
    %v1213 = vmul.f32 %v1205, %v1173
    %v1214 = vmul.f32 %v1206, %v1174
    %v1215 = vadd.f32 %v1207, -0.28449672
    %v1216 = vadd.f32 %v1208, -0.28449672
    %v1217 = vadd.f32 %v1209, -0.28449672
    %v1218 = vadd.f32 %v1210, -0.28449672
    %v1219 = vadd.f32 %v1211, -0.28449672
    %v1220 = vadd.f32 %v1212, -0.28449672
    %v1221 = vadd.f32 %v1213, -0.28449672
    %v1222 = vadd.f32 %v1214, -0.28449672
    %v1223 = vmul.f32 %v1215, %v1167
    %v1224 = vmul.f32 %v1216, %v1168
    %v1225 = vmul.f32 %v1217, %v1169
    %v1226 = vmul.f32 %v1218, %v1170
    %v1227 = vmul.f32 %v1219, %v1171
    %v1228 = vmul.f32 %v1220, %v1172
    %v1229 = vmul.f32 %v1221, %v1173
    %v1230 = vmul.f32 %v1222, %v1174
    %v1231 = vadd.f32 %v1223, 0.2548296
    %v1232 = vadd.f32 %v1224, 0.2548296
    %v1233 = vadd.f32 %v1225, 0.2548296
    %v1234 = vadd.f32 %v1226, 0.2548296
    %v1235 = vadd.f32 %v1227, 0.2548296
    %v1236 = vadd.f32 %v1228, 0.2548296
    %v1237 = vadd.f32 %v1229, 0.2548296
    %v1238 = vadd.f32 %v1230, 0.2548296
    %v1239 = vmul.f32 %v1231, %v1167
    %v1240 = vmul.f32 %v1232, %v1168
    %v1241 = vmul.f32 %v1233, %v1169
    %v1242 = vmul.f32 %v1234, %v1170
    %v1243 = vmul.f32 %v1235, %v1171
    %v1244 = vmul.f32 %v1236, %v1172
    %v1245 = vmul.f32 %v1237, %v1173
    %v1246 = vmul.f32 %v1238, %v1174
    %v1247 = vsub.f32 0.0, %v1143
    %v1248 = vsub.f32 0.0, %v1144
    %v1249 = vsub.f32 0.0, %v1145
    %v1250 = vsub.f32 0.0, %v1146
    %v1251 = vsub.f32 0.0, %v1147
    %v1252 = vsub.f32 0.0, %v1148
    %v1253 = vsub.f32 0.0, %v1149
    %v1254 = vsub.f32 0.0, %v1150
    %v1255 = vmul.f32 %v1247, %v1143
    %v1256 = vmul.f32 %v1248, %v1144
    %v1257 = vmul.f32 %v1249, %v1145
    %v1258 = vmul.f32 %v1250, %v1146
    %v1259 = vmul.f32 %v1251, %v1147
    %v1260 = vmul.f32 %v1252, %v1148
    %v1261 = vmul.f32 %v1253, %v1149
    %v1262 = vmul.f32 %v1254, %v1150
    %v1263 = vmul.f32 %v1255, 1.442695
    %v1264 = vpow.pop %v1263
    %v1265 = vmul.f32 %v1256, 1.442695
    %v1266 = vpow.pop %v1265
    %v1267 = vmul.f32 %v1257, 1.442695
    %v1268 = vpow.pop %v1267
    %v1269 = vmul.f32 %v1258, 1.442695
    %v1270 = vpow.pop %v1269
    %v1271 = vmul.f32 %v1259, 1.442695
    %v1272 = vpow.pop %v1271
    %v1273 = vmul.f32 %v1260, 1.442695
    %v1274 = vpow.pop %v1273
    %v1275 = vmul.f32 %v1261, 1.442695
    %v1276 = vpow.pop %v1275
    %v1277 = vmul.f32 %v1262, 1.442695
    %v1278 = vpow.pop %v1277
    %v1279 = vmul.f32 %v1239, %v1264
    %v1280 = vmul.f32 %v1240, %v1266
    %v1281 = vmul.f32 %v1241, %v1268
    %v1282 = vmul.f32 %v1242, %v1270
    %v1283 = vmul.f32 %v1243, %v1272
    %v1284 = vmul.f32 %v1244, %v1274
    %v1285 = vmul.f32 %v1245, %v1276
    %v1286 = vmul.f32 %v1246, %v1278
    %v1287 = vsub.f32 1.0, %v1279
    %v1288 = vsub.f32 1.0, %v1280
    %v1289 = vsub.f32 1.0, %v1281
    %v1290 = vsub.f32 1.0, %v1282
    %v1291 = vsub.f32 1.0, %v1283
    %v1292 = vsub.f32 1.0, %v1284
    %v1293 = vsub.f32 1.0, %v1285
    %v1294 = vsub.f32 1.0, %v1286
    %vm1295 = vcmp.ge.f32.partialorder %v1135, 0.0
    %vm1296 = vcmp.ge.f32.partialorder %v1136, 0.0
    %vm1297 = vcmp.ge.f32.partialorder %v1137, 0.0
    %vm1298 = vcmp.ge.f32.partialorder %v1138, 0.0
    %vm1299 = vcmp.ge.f32.partialorder %v1139, 0.0
    %vm1300 = vcmp.ge.f32.partialorder %v1140, 0.0
    %vm1301 = vcmp.ge.f32.partialorder %v1141, 0.0
    %vm1302 = vcmp.ge.f32.partialorder %v1142, 0.0
    %v1303 = vsub.f32 0.0, %v1287
    %v1304 = vsub.f32 0.0, %v1288
    %v1305 = vsub.f32 0.0, %v1289
    %v1306 = vsub.f32 0.0, %v1290
    %v1307 = vsub.f32 0.0, %v1291
    %v1308 = vsub.f32 0.0, %v1292
    %v1309 = vsub.f32 0.0, %v1293
    %v1310 = vsub.f32 0.0, %v1294
    %v1311 = vsel %vm1295, %v1287, %v1303
    %v1312 = vsel %vm1296, %v1288, %v1304
    %v1313 = vsel %vm1297, %v1289, %v1305
    %v1314 = vsel %vm1298, %v1290, %v1306
    %v1315 = vsel %vm1299, %v1291, %v1307
    %v1316 = vsel %vm1300, %v1292, %v1308
    %v1317 = vsel %vm1301, %v1293, %v1309
    %v1318 = vsel %vm1302, %v1294, %v1310
    %v1319 = vadd.f32 %v1311, 1.0
    %v1320 = vadd.f32 %v1312, 1.0
    %v1321 = vadd.f32 %v1313, 1.0
    %v1322 = vadd.f32 %v1314, 1.0
    %v1323 = vadd.f32 %v1315, 1.0
    %v1324 = vadd.f32 %v1316, 1.0
    %v1325 = vadd.f32 %v1317, 1.0
    %v1326 = vadd.f32 %v1318, 1.0
    %v1327 = vmul.f32 %v1127, %v1319
    %v1328 = vmul.f32 %v1128, %v1320
    %v1329 = vmul.f32 %v1129, %v1321
    %v1330 = vmul.f32 %v1130, %v1322
    %v1331 = vmul.f32 %v1131, %v1323
    %v1332 = vmul.f32 %v1132, %v1324
    %v1333 = vmul.f32 %v1133, %v1325
    %v1334 = vmul.f32 %v1134, %v1326
    %v1335 = vld [vmem:[%s7] sm:$0xff]
    %v1336 = vld [vmem:[%s7 + $0x8] sm:$0xff]
    %v1337 = vld [vmem:[%s7 + $0x10] sm:$0xff]
    %v1338 = vld [vmem:[%s7 + $0x18] sm:$0xff]
    %v1339 = vld [vmem:[%s7 + $0x20] sm:$0xff]
    %v1340 = vld [vmem:[%s7 + $0x28] sm:$0xff]
    %v1341 = vld [vmem:[%s7 + $0x30] sm:$0xff]
    %v1342 = vld [vmem:[%s7 + $0x38] sm:$0xff]
    %v1343 = vld [vmem:[#allocation6 + $0x5] sm:$0x1]
    %v1344 = vperm.slane %v1343, 0
    %v1346 = vsel %vm1061, %v1327, 0
    %v1349 = vsel %vm1061, %v1328, 0
    %v1352 = vsel %vm1061, %v1329, 0
    %v1355 = vsel %vm1061, %v1330, 0
    %v1358 = vsel %vm1061, %v1331, 0
    %v1361 = vsel %vm1061, %v1332, 0
    %v1364 = vsel %vm1061, %v1333, 0
    %v1367 = vsel %vm1061, %v1334, 0
    %1369 = vmatpush.msra.mxu0 0.0
    %1370 = vmatpush.msra.mxu0 0.0
    %1371 = vmatpush.msra.mxu0 0.0
    %1372 = vmatpush.msra.mxu0 0.0
    %1373 = vmatpush.msra.mxu0 0.0
    %1374 = vmatpush.msra.mxu0 0.0
    %1375 = vmatpush.msra.mxu0 0.0
    %1376 = vmatpush.msra.mxu0 0.0
    %1377 = vmatpush.msra.mxu0 %v1342
    %1378 = vmatpush.msra.mxu0 %v1341
    %1379 = vmatpush.msra.mxu0 %v1340
    %1380 = vmatpush.msra.mxu0 %v1339
    %1381 = vmatpush.msra.mxu0 %v1338
    %1382 = vmatpush.msra.mxu0 %v1337
    %1383 = vmatpush.msra.mxu0 %v1336
    %1384 = vmatpush.msra.mxu0 %v1335
    %1385 = vmatmul.f32.gmra.mxu0 %v1346
    %v1386 = vpop.f32.mrf.mxu0
    %v1387 = vadd.f32 %v1344, %v1386
    %1388 = vmatmul.f32.gmra.mxu0 %v1349
    %v1389 = vpop.f32.mrf.mxu0
    %v1390 = vadd.f32 %v1344, %v1389
    %1391 = vmatmul.f32.gmra.mxu0 %v1352
    %v1392 = vpop.f32.mrf.mxu0
    %v1393 = vadd.f32 %v1344, %v1392
    %1394 = vmatmul.f32.gmra.mxu0 %v1355
    %v1395 = vpop.f32.mrf.mxu0
    %v1396 = vadd.f32 %v1344, %v1395
    %1397 = vmatmul.f32.gmra.mxu0 %v1358
    %v1398 = vpop.f32.mrf.mxu0
    %v1399 = vadd.f32 %v1344, %v1398
    %1400 = vmatmul.f32.gmra.mxu0 %v1361
    %v1401 = vpop.f32.mrf.mxu0
    %v1402 = vadd.f32 %v1344, %v1401
    %1403 = vmatmul.f32.gmra.mxu0 %v1364
    %v1404 = vpop.f32.mrf.mxu0
    %v1405 = vadd.f32 %v1344, %v1404
    %1406 = vmatmul.f32.gmra.mxu0 %v1367
    %v1407 = vpop.f32.mrf.mxu0
    %v1408 = vadd.f32 %v1344, %v1407
    %1409 = vdwg.mxu0
    %v1410 = vld [vmem:[#allocation6 + $0x6] sm:$0x1]
    %v1411 = vld [vmem:[#allocation6 + $0x8] sm:$0x1]
    %v1412 = vld [vmem:[#allocation6 + $0xa] sm:$0x1]
    %v1413 = vld [vmem:[%s8] sm:$0xff]
    %v1414 = vld [vmem:[%s8 + $0x8] sm:$0xff]
    %v1415 = vld [vmem:[%s8 + $0x10] sm:$0xff]
    %v1416 = vld [vmem:[%s8 + $0x18] sm:$0xff]
    %v1417 = vperm.slane %v1410, 0
    %vm1418 = vcmask 261120
    %v1420 = vsel %vm1418, %v1387, 0
    %v1423 = vsel %vm1418, %v1390, 0
    %v1426 = vsel %vm1418, %v1393, 0
    %v1429 = vsel %vm1418, %v1396, 0
    %v1432 = vsel %vm1418, %v1399, 0
    %v1435 = vsel %vm1418, %v1402, 0
    %v1438 = vsel %vm1418, %v1405, 0
    %v1441 = vsel %vm1418, %v1408, 0
    %1443 = vmatpush.msra.mxu0 0.0
    %1444 = vmatpush.msra.mxu0 0.0
    %1445 = vmatpush.msra.mxu0 0.0
    %1446 = vmatpush.msra.mxu0 0.0
    %1447 = vmatpush.msra.mxu0 0.0
    %1448 = vmatpush.msra.mxu0 0.0
    %1449 = vmatpush.msra.mxu0 0.0
    %1450 = vmatpush.msra.mxu0 0.0
    %1451 = vmatpush.msra.mxu0 0.0
    %1452 = vmatpush.msra.mxu0 0.0
    %1453 = vmatpush.msra.mxu0 0.0
    %1454 = vmatpush.msra.mxu0 0.0
    %1455 = vmatpush.msra.mxu0 %v1416
    %1456 = vmatpush.msra.mxu0 %v1415
    %1457 = vmatpush.msra.mxu0 %v1414
    %1458 = vmatpush.msra.mxu0 %v1413
    %1459 = vmatmul.f32.gmra.mxu0 %v1420
    %v1460 = vpop.f32.mrf.mxu0
    %v1461 = vadd.f32 %v1417, %v1460
    %1462 = vmatmul.f32.gmra.mxu0 %v1423
    %v1463 = vpop.f32.mrf.mxu0
    %v1464 = vadd.f32 %v1417, %v1463
    %1465 = vmatmul.f32.gmra.mxu0 %v1426
    %v1466 = vpop.f32.mrf.mxu0
    %v1467 = vadd.f32 %v1417, %v1466
    %1468 = vmatmul.f32.gmra.mxu0 %v1429
    %v1469 = vpop.f32.mrf.mxu0
    %v1470 = vadd.f32 %v1417, %v1469
    %1471 = vmatmul.f32.gmra.mxu0 %v1432
    %v1472 = vpop.f32.mrf.mxu0
    %v1473 = vadd.f32 %v1417, %v1472
    %1474 = vmatmul.f32.gmra.mxu0 %v1435
    %v1475 = vpop.f32.mrf.mxu0
    %v1476 = vadd.f32 %v1417, %v1475
    %1477 = vmatmul.f32.gmra.mxu0 %v1438
    %v1478 = vpop.f32.mrf.mxu0
    %v1479 = vadd.f32 %v1417, %v1478
    %1480 = vmatmul.f32.gmra.mxu0 %v1441
    %v1481 = vpop.f32.mrf.mxu0
    %v1482 = vadd.f32 %v1417, %v1481
    %1483 = vdwg.mxu0
    %v1484 = vadd.f32 %v1387, %v1461
    %v1485 = vadd.f32 %v1390, %v1464
    %v1486 = vadd.f32 %v1393, %v1467
    %v1487 = vadd.f32 %v1396, %v1470
    %v1488 = vadd.f32 %v1399, %v1473
    %v1489 = vadd.f32 %v1402, %v1476
    %v1490 = vadd.f32 %v1405, %v1479
    %v1491 = vadd.f32 %v1408, %v1482
    %v1492 = vsel %vm1418, %v1484, 0.0
    %1493 = vadd.xlane.f32.xlu0 %v1492
    %v1494 = vpop.xlane.xlu0 %1493
    %v1495 = vsel %vm1418, %v1485, 0.0
    %1496 = vadd.xlane.f32.xlu0 %v1495
    %v1497 = vpop.xlane.xlu0 %1496
    %v1498 = vsel %vm1418, %v1486, 0.0
    %1499 = vadd.xlane.f32.xlu0 %v1498
    %v1500 = vpop.xlane.xlu0 %1499
    %v1501 = vsel %vm1418, %v1487, 0.0
    %1502 = vadd.xlane.f32.xlu0 %v1501
    %v1503 = vpop.xlane.xlu0 %1502
    %v1504 = vsel %vm1418, %v1488, 0.0
    %1505 = vadd.xlane.f32.xlu0 %v1504
    %v1506 = vpop.xlane.xlu0 %1505
    %v1507 = vsel %vm1418, %v1489, 0.0
    %1508 = vadd.xlane.f32.xlu0 %v1507
    %v1509 = vpop.xlane.xlu0 %1508
    %v1510 = vsel %vm1418, %v1490, 0.0
    %1511 = vadd.xlane.f32.xlu0 %v1510
    %v1512 = vpop.xlane.xlu0 %1511
    %v1513 = vsel %vm1418, %v1491, 0.0
    %1514 = vadd.xlane.f32.xlu0 %v1513
    %v1515 = vpop.xlane.xlu0 %1514
    %v1516 = vrcp.pop 32.0
    %v1517 = vmul.f32 32.0, %v1516
    %v1518 = vsub.f32 1.0, %v1517
    %v1519 = vmul.f32 %v1516, %v1518
    %v1520 = vadd.f32 %v1516, %v1519
    %vm1521 = vweird.f32 %v1516
    %v1522 = vsel %vm1521, %v1516, %v1520
    %v1523 = vmul.f32 %v1494, %v1522
    %v1524 = vmul.f32 %v1497, %v1522
    %v1525 = vmul.f32 %v1500, %v1522
    %v1526 = vmul.f32 %v1503, %v1522
    %v1527 = vmul.f32 %v1506, %v1522
    %v1528 = vmul.f32 %v1509, %v1522
    %v1529 = vmul.f32 %v1512, %v1522
    %v1530 = vmul.f32 %v1515, %v1522
    %v1531 = vmul.f32 %v1484, %v1484
    %v1532 = vmul.f32 %v1485, %v1485
    %v1533 = vmul.f32 %v1486, %v1486
    %v1534 = vmul.f32 %v1487, %v1487
    %v1535 = vmul.f32 %v1488, %v1488
    %v1536 = vmul.f32 %v1489, %v1489
    %v1537 = vmul.f32 %v1490, %v1490
    %v1538 = vmul.f32 %v1491, %v1491
    %v1539 = vsel %vm1418, %v1531, 0.0
    %1540 = vadd.xlane.f32.xlu0 %v1539
    %v1541 = vpop.xlane.xlu0 %1540
    %v1542 = vsel %vm1418, %v1532, 0.0
    %1543 = vadd.xlane.f32.xlu0 %v1542
    %v1544 = vpop.xlane.xlu0 %1543
    %v1545 = vsel %vm1418, %v1533, 0.0
    %1546 = vadd.xlane.f32.xlu0 %v1545
    %v1547 = vpop.xlane.xlu0 %1546
    %v1548 = vsel %vm1418, %v1534, 0.0
    %1549 = vadd.xlane.f32.xlu0 %v1548
    %v1550 = vpop.xlane.xlu0 %1549
    %v1551 = vsel %vm1418, %v1535, 0.0
    %1552 = vadd.xlane.f32.xlu0 %v1551
    %v1553 = vpop.xlane.xlu0 %1552
    %v1554 = vsel %vm1418, %v1536, 0.0
    %1555 = vadd.xlane.f32.xlu0 %v1554
    %v1556 = vpop.xlane.xlu0 %1555
    %v1557 = vsel %vm1418, %v1537, 0.0
    %1558 = vadd.xlane.f32.xlu0 %v1557
    %v1559 = vpop.xlane.xlu0 %1558
    %v1560 = vsel %vm1418, %v1538, 0.0
    %1561 = vadd.xlane.f32.xlu0 %v1560
    %v1562 = vpop.xlane.xlu0 %1561
    %v1563 = vmul.f32 %v1541, %v1522
    %v1564 = vmul.f32 %v1544, %v1522
    %v1565 = vmul.f32 %v1547, %v1522
    %v1566 = vmul.f32 %v1550, %v1522
    %v1567 = vmul.f32 %v1553, %v1522
    %v1568 = vmul.f32 %v1556, %v1522
    %v1569 = vmul.f32 %v1559, %v1522
    %v1570 = vmul.f32 %v1562, %v1522
    %v1571 = vmul.f32 %v1523, %v1523
    %v1572 = vmul.f32 %v1524, %v1524
    %v1573 = vmul.f32 %v1525, %v1525
    %v1574 = vmul.f32 %v1526, %v1526
    %v1575 = vmul.f32 %v1527, %v1527
    %v1576 = vmul.f32 %v1528, %v1528
    %v1577 = vmul.f32 %v1529, %v1529
    %v1578 = vmul.f32 %v1530, %v1530
    %v1579 = vsub.f32 %v1563, %v1571
    %v1580 = vsub.f32 %v1564, %v1572
    %v1581 = vsub.f32 %v1565, %v1573
    %v1582 = vsub.f32 %v1566, %v1574
    %v1583 = vsub.f32 %v1567, %v1575
    %v1584 = vsub.f32 %v1568, %v1576
    %v1585 = vsub.f32 %v1569, %v1577
    %v1586 = vsub.f32 %v1570, %v1578
    %v1587 = vsub.f32 %v1484, %v1523
    %v1588 = vsub.f32 %v1485, %v1524
    %v1589 = vsub.f32 %v1486, %v1525
    %v1590 = vsub.f32 %v1487, %v1526
    %v1591 = vsub.f32 %v1488, %v1527
    %v1592 = vsub.f32 %v1489, %v1528
    %v1593 = vsub.f32 %v1490, %v1529
    %v1594 = vsub.f32 %v1491, %v1530
    %v1595 = vadd.f32 %v1579, 1e-05
    %v1596 = vadd.f32 %v1580, 1e-05
    %v1597 = vadd.f32 %v1581, 1e-05
    %v1598 = vadd.f32 %v1582, 1e-05
    %v1599 = vadd.f32 %v1583, 1e-05
    %v1600 = vadd.f32 %v1584, 1e-05
    %v1601 = vadd.f32 %v1585, 1e-05
    %v1602 = vadd.f32 %v1586, 1e-05
    %v1603 = vrsqrt.pop %v1595
    %v1604 = vmul.f32 %v1603, %v1595
    %v1605 = vmul.f32 %v1604, %v1603
    %v1606 = vmul.f32 0.5, %v1605
    %v1607 = vsub.f32 1.5, %v1606
    %v1608 = vmul.f32 %v1603, %v1607
    %vm1609 = vweird.f32 %v1595
    %vm1610 = vweird.f32 %v1603
    %vm1611 = vmor %vm1609, %vm1610
    %v1612 = vsel %vm1611, %v1603, %v1608
    %v1613 = vrsqrt.pop %v1596
    %v1614 = vmul.f32 %v1613, %v1596
    %v1615 = vmul.f32 %v1614, %v1613
    %v1616 = vmul.f32 0.5, %v1615
    %v1617 = vsub.f32 1.5, %v1616
    %v1618 = vmul.f32 %v1613, %v1617
    %vm1619 = vweird.f32 %v1596
    %vm1620 = vweird.f32 %v1613
    %vm1621 = vmor %vm1619, %vm1620
    %v1622 = vsel %vm1621, %v1613, %v1618
    %v1623 = vrsqrt.pop %v1597
    %v1624 = vmul.f32 %v1623, %v1597
    %v1625 = vmul.f32 %v1624, %v1623
    %v1626 = vmul.f32 0.5, %v1625
    %v1627 = vsub.f32 1.5, %v1626
    %v1628 = vmul.f32 %v1623, %v1627
    %vm1629 = vweird.f32 %v1597
    %vm1630 = vweird.f32 %v1623
    %vm1631 = vmor %vm1629, %vm1630
    %v1632 = vsel %vm1631, %v1623, %v1628
    %v1633 = vrsqrt.pop %v1598
    %v1634 = vmul.f32 %v1633, %v1598
    %v1635 = vmul.f32 %v1634, %v1633
    %v1636 = vmul.f32 0.5, %v1635
    %v1637 = vsub.f32 1.5, %v1636
    %v1638 = vmul.f32 %v1633, %v1637
    %vm1639 = vweird.f32 %v1598
    %vm1640 = vweird.f32 %v1633
    %vm1641 = vmor %vm1639, %vm1640
    %v1642 = vsel %vm1641, %v1633, %v1638
    %v1643 = vrsqrt.pop %v1599
    %v1644 = vmul.f32 %v1643, %v1599
    %v1645 = vmul.f32 %v1644, %v1643
    %v1646 = vmul.f32 0.5, %v1645
    %v1647 = vsub.f32 1.5, %v1646
    %v1648 = vmul.f32 %v1643, %v1647
    %vm1649 = vweird.f32 %v1599
    %vm1650 = vweird.f32 %v1643
    %vm1651 = vmor %vm1649, %vm1650
    %v1652 = vsel %vm1651, %v1643, %v1648
    %v1653 = vrsqrt.pop %v1600
    %v1654 = vmul.f32 %v1653, %v1600
    %v1655 = vmul.f32 %v1654, %v1653
    %v1656 = vmul.f32 0.5, %v1655
    %v1657 = vsub.f32 1.5, %v1656
    %v1658 = vmul.f32 %v1653, %v1657
    %vm1659 = vweird.f32 %v1600
    %vm1660 = vweird.f32 %v1653
    %vm1661 = vmor %vm1659, %vm1660
    %v1662 = vsel %vm1661, %v1653, %v1658
    %v1663 = vrsqrt.pop %v1601
    %v1664 = vmul.f32 %v1663, %v1601
    %v1665 = vmul.f32 %v1664, %v1663
    %v1666 = vmul.f32 0.5, %v1665
    %v1667 = vsub.f32 1.5, %v1666
    %v1668 = vmul.f32 %v1663, %v1667
    %vm1669 = vweird.f32 %v1601
    %vm1670 = vweird.f32 %v1663
    %vm1671 = vmor %vm1669, %vm1670
    %v1672 = vsel %vm1671, %v1663, %v1668
    %v1673 = vrsqrt.pop %v1602
    %v1674 = vmul.f32 %v1673, %v1602
    %v1675 = vmul.f32 %v1674, %v1673
    %v1676 = vmul.f32 0.5, %v1675
    %v1677 = vsub.f32 1.5, %v1676
    %v1678 = vmul.f32 %v1673, %v1677
    %vm1679 = vweird.f32 %v1602
    %vm1680 = vweird.f32 %v1673
    %vm1681 = vmor %vm1679, %vm1680
    %v1682 = vsel %vm1681, %v1673, %v1678
    %v1683 = vmul.f32 %v1587, %v1612
    %v1684 = vmul.f32 %v1588, %v1622
    %v1685 = vmul.f32 %v1589, %v1632
    %v1686 = vmul.f32 %v1590, %v1642
    %v1687 = vmul.f32 %v1591, %v1652
    %v1688 = vmul.f32 %v1592, %v1662
    %v1689 = vmul.f32 %v1593, %v1672
    %v1690 = vmul.f32 %v1594, %v1682
    %v1691 = vperm.slane %v1411, 0
    %v1692 = vmul.f32 %v1683, %v1691
    %v1693 = vmul.f32 %v1684, %v1691
    %v1694 = vmul.f32 %v1685, %v1691
    %v1695 = vmul.f32 %v1686, %v1691
    %v1696 = vmul.f32 %v1687, %v1691
    %v1697 = vmul.f32 %v1688, %v1691
    %v1698 = vmul.f32 %v1689, %v1691
    %v1699 = vmul.f32 %v1690, %v1691
    %v1700 = vperm.slane %v1412, 0
    %v1701 = vadd.f32 %v1692, %v1700
    %v1702 = vadd.f32 %v1693, %v1700
    %v1703 = vadd.f32 %v1694, %v1700
    %v1704 = vadd.f32 %v1695, %v1700
    %v1705 = vadd.f32 %v1696, %v1700
    %v1706 = vadd.f32 %v1697, %v1700
    %v1707 = vadd.f32 %v1698, %v1700
    %v1708 = vadd.f32 %v1699, %v1700
    %v1709 = vld [vmem:[#allocation6 + $0x7] sm:$0x1]
    %v1710 = vld [vmem:[#allocation6 + $0x9] sm:$0x1]
    %v1711 = vld [vmem:[#allocation6 + $0xb] sm:$0x1]
    %s1712 = scalar_lea.vmem %s8, 32
    %v1713 = vld [vmem:[%s1712] sm:$0xff]
    %v1714 = vld [vmem:[%s1712 + $0x8] sm:$0xff]
    %v1715 = vld [vmem:[%s1712 + $0x10] sm:$0xff]
    %v1716 = vld [vmem:[%s1712 + $0x18] sm:$0xff]
    %v1717 = vperm.slane %v1709, 0
    %v1719 = vsel %vm1418, %v1701, 0
    %v1722 = vsel %vm1418, %v1702, 0
    %v1725 = vsel %vm1418, %v1703, 0
    %v1728 = vsel %vm1418, %v1704, 0
    %v1731 = vsel %vm1418, %v1705, 0
    %v1734 = vsel %vm1418, %v1706, 0
    %v1737 = vsel %vm1418, %v1707, 0
    %v1740 = vsel %vm1418, %v1708, 0
    %1742 = vmatpush.msra.mxu0 0.0
    %1743 = vmatpush.msra.mxu0 0.0
    %1744 = vmatpush.msra.mxu0 0.0
    %1745 = vmatpush.msra.mxu0 0.0
    %1746 = vmatpush.msra.mxu0 0.0
    %1747 = vmatpush.msra.mxu0 0.0
    %1748 = vmatpush.msra.mxu0 0.0
    %1749 = vmatpush.msra.mxu0 0.0
    %1750 = vmatpush.msra.mxu0 0.0
    %1751 = vmatpush.msra.mxu0 0.0
    %1752 = vmatpush.msra.mxu0 0.0
    %1753 = vmatpush.msra.mxu0 0.0
    %1754 = vmatpush.msra.mxu0 %v1716
    %1755 = vmatpush.msra.mxu0 %v1715
    %1756 = vmatpush.msra.mxu0 %v1714
    %1757 = vmatpush.msra.mxu0 %v1713
    %1758 = vmatmul.f32.gmra.mxu0 %v1719
    %v1759 = vpop.f32.mrf.mxu0
    %v1760 = vadd.f32 %v1717, %v1759
    %1761 = vmatmul.f32.gmra.mxu0 %v1722
    %v1762 = vpop.f32.mrf.mxu0
    %v1763 = vadd.f32 %v1717, %v1762
    %1764 = vmatmul.f32.gmra.mxu0 %v1725
    %v1765 = vpop.f32.mrf.mxu0
    %v1766 = vadd.f32 %v1717, %v1765
    %1767 = vmatmul.f32.gmra.mxu0 %v1728
    %v1768 = vpop.f32.mrf.mxu0
    %v1769 = vadd.f32 %v1717, %v1768
    %1770 = vmatmul.f32.gmra.mxu0 %v1731
    %v1771 = vpop.f32.mrf.mxu0
    %v1772 = vadd.f32 %v1717, %v1771
    %1773 = vmatmul.f32.gmra.mxu0 %v1734
    %v1774 = vpop.f32.mrf.mxu0
    %v1775 = vadd.f32 %v1717, %v1774
    %1776 = vmatmul.f32.gmra.mxu0 %v1737
    %v1777 = vpop.f32.mrf.mxu0
    %v1778 = vadd.f32 %v1717, %v1777
    %1779 = vmatmul.f32.gmra.mxu0 %v1740
    %v1780 = vpop.f32.mrf.mxu0
    %v1781 = vadd.f32 %v1717, %v1780
    %1782 = vdwg.mxu0
    %v1783 = vadd.f32 %v1701, %v1760
    %v1784 = vadd.f32 %v1702, %v1763
    %v1785 = vadd.f32 %v1703, %v1766
    %v1786 = vadd.f32 %v1704, %v1769
    %v1787 = vadd.f32 %v1705, %v1772
    %v1788 = vadd.f32 %v1706, %v1775
    %v1789 = vadd.f32 %v1707, %v1778
    %v1790 = vadd.f32 %v1708, %v1781
    %v1791 = vsel %vm1418, %v1783, 0.0
    %1792 = vadd.xlane.f32.xlu0 %v1791
    %v1793 = vpop.xlane.xlu0 %1792
    %v1794 = vsel %vm1418, %v1784, 0.0
    %1795 = vadd.xlane.f32.xlu0 %v1794
    %v1796 = vpop.xlane.xlu0 %1795
    %v1797 = vsel %vm1418, %v1785, 0.0
    %1798 = vadd.xlane.f32.xlu0 %v1797
    %v1799 = vpop.xlane.xlu0 %1798
    %v1800 = vsel %vm1418, %v1786, 0.0
    %1801 = vadd.xlane.f32.xlu0 %v1800
    %v1802 = vpop.xlane.xlu0 %1801
    %v1803 = vsel %vm1418, %v1787, 0.0
    %1804 = vadd.xlane.f32.xlu0 %v1803
    %v1805 = vpop.xlane.xlu0 %1804
    %v1806 = vsel %vm1418, %v1788, 0.0
    %1807 = vadd.xlane.f32.xlu0 %v1806
    %v1808 = vpop.xlane.xlu0 %1807
    %v1809 = vsel %vm1418, %v1789, 0.0
    %1810 = vadd.xlane.f32.xlu0 %v1809
    %v1811 = vpop.xlane.xlu0 %1810
    %v1812 = vsel %vm1418, %v1790, 0.0
    %1813 = vadd.xlane.f32.xlu0 %v1812
    %v1814 = vpop.xlane.xlu0 %1813
    %v1815 = vmul.f32 %v1793, %v1522
    %v1816 = vmul.f32 %v1796, %v1522
    %v1817 = vmul.f32 %v1799, %v1522
    %v1818 = vmul.f32 %v1802, %v1522
    %v1819 = vmul.f32 %v1805, %v1522
    %v1820 = vmul.f32 %v1808, %v1522
    %v1821 = vmul.f32 %v1811, %v1522
    %v1822 = vmul.f32 %v1814, %v1522
    %v1823 = vmul.f32 %v1783, %v1783
    %v1824 = vmul.f32 %v1784, %v1784
    %v1825 = vmul.f32 %v1785, %v1785
    %v1826 = vmul.f32 %v1786, %v1786
    %v1827 = vmul.f32 %v1787, %v1787
    %v1828 = vmul.f32 %v1788, %v1788
    %v1829 = vmul.f32 %v1789, %v1789
    %v1830 = vmul.f32 %v1790, %v1790
    %v1831 = vsel %vm1418, %v1823, 0.0
    %1832 = vadd.xlane.f32.xlu0 %v1831
    %v1833 = vpop.xlane.xlu0 %1832
    %v1834 = vsel %vm1418, %v1824, 0.0
    %1835 = vadd.xlane.f32.xlu0 %v1834
    %v1836 = vpop.xlane.xlu0 %1835
    %v1837 = vsel %vm1418, %v1825, 0.0
    %1838 = vadd.xlane.f32.xlu0 %v1837
    %v1839 = vpop.xlane.xlu0 %1838
    %v1840 = vsel %vm1418, %v1826, 0.0
    %1841 = vadd.xlane.f32.xlu0 %v1840
    %v1842 = vpop.xlane.xlu0 %1841
    %v1843 = vsel %vm1418, %v1827, 0.0
    %1844 = vadd.xlane.f32.xlu0 %v1843
    %v1845 = vpop.xlane.xlu0 %1844
    %v1846 = vsel %vm1418, %v1828, 0.0
    %1847 = vadd.xlane.f32.xlu0 %v1846
    %v1848 = vpop.xlane.xlu0 %1847
    %v1849 = vsel %vm1418, %v1829, 0.0
    %1850 = vadd.xlane.f32.xlu0 %v1849
    %v1851 = vpop.xlane.xlu0 %1850
    %v1852 = vsel %vm1418, %v1830, 0.0
    %1853 = vadd.xlane.f32.xlu0 %v1852
    %v1854 = vpop.xlane.xlu0 %1853
    %v1855 = vmul.f32 %v1833, %v1522
    %v1856 = vmul.f32 %v1836, %v1522
    %v1857 = vmul.f32 %v1839, %v1522
    %v1858 = vmul.f32 %v1842, %v1522
    %v1859 = vmul.f32 %v1845, %v1522
    %v1860 = vmul.f32 %v1848, %v1522
    %v1861 = vmul.f32 %v1851, %v1522
    %v1862 = vmul.f32 %v1854, %v1522
    %v1863 = vmul.f32 %v1815, %v1815
    %v1864 = vmul.f32 %v1816, %v1816
    %v1865 = vmul.f32 %v1817, %v1817
    %v1866 = vmul.f32 %v1818, %v1818
    %v1867 = vmul.f32 %v1819, %v1819
    %v1868 = vmul.f32 %v1820, %v1820
    %v1869 = vmul.f32 %v1821, %v1821
    %v1870 = vmul.f32 %v1822, %v1822
    %v1871 = vsub.f32 %v1855, %v1863
    %v1872 = vsub.f32 %v1856, %v1864
    %v1873 = vsub.f32 %v1857, %v1865
    %v1874 = vsub.f32 %v1858, %v1866
    %v1875 = vsub.f32 %v1859, %v1867
    %v1876 = vsub.f32 %v1860, %v1868
    %v1877 = vsub.f32 %v1861, %v1869
    %v1878 = vsub.f32 %v1862, %v1870
    %v1879 = vsub.f32 %v1783, %v1815
    %v1880 = vsub.f32 %v1784, %v1816
    %v1881 = vsub.f32 %v1785, %v1817
    %v1882 = vsub.f32 %v1786, %v1818
    %v1883 = vsub.f32 %v1787, %v1819
    %v1884 = vsub.f32 %v1788, %v1820
    %v1885 = vsub.f32 %v1789, %v1821
    %v1886 = vsub.f32 %v1790, %v1822
    %v1887 = vadd.f32 %v1871, 1e-05
    %v1888 = vadd.f32 %v1872, 1e-05
    %v1889 = vadd.f32 %v1873, 1e-05
    %v1890 = vadd.f32 %v1874, 1e-05
    %v1891 = vadd.f32 %v1875, 1e-05
    %v1892 = vadd.f32 %v1876, 1e-05
    %v1893 = vadd.f32 %v1877, 1e-05
    %v1894 = vadd.f32 %v1878, 1e-05
    %v1895 = vrsqrt.pop %v1887
    %v1896 = vmul.f32 %v1895, %v1887
    %v1897 = vmul.f32 %v1896, %v1895
    %v1898 = vmul.f32 0.5, %v1897
    %v1899 = vsub.f32 1.5, %v1898
    %v1900 = vmul.f32 %v1895, %v1899
    %vm1901 = vweird.f32 %v1887
    %vm1902 = vweird.f32 %v1895
    %vm1903 = vmor %vm1901, %vm1902
    %v1904 = vsel %vm1903, %v1895, %v1900
    %v1905 = vrsqrt.pop %v1888
    %v1906 = vmul.f32 %v1905, %v1888
    %v1907 = vmul.f32 %v1906, %v1905
    %v1908 = vmul.f32 0.5, %v1907
    %v1909 = vsub.f32 1.5, %v1908
    %v1910 = vmul.f32 %v1905, %v1909
    %vm1911 = vweird.f32 %v1888
    %vm1912 = vweird.f32 %v1905
    %vm1913 = vmor %vm1911, %vm1912
    %v1914 = vsel %vm1913, %v1905, %v1910
    %v1915 = vrsqrt.pop %v1889
    %v1916 = vmul.f32 %v1915, %v1889
    %v1917 = vmul.f32 %v1916, %v1915
    %v1918 = vmul.f32 0.5, %v1917
    %v1919 = vsub.f32 1.5, %v1918
    %v1920 = vmul.f32 %v1915, %v1919
    %vm1921 = vweird.f32 %v1889
    %vm1922 = vweird.f32 %v1915
    %vm1923 = vmor %vm1921, %vm1922
    %v1924 = vsel %vm1923, %v1915, %v1920
    %v1925 = vrsqrt.pop %v1890
    %v1926 = vmul.f32 %v1925, %v1890
    %v1927 = vmul.f32 %v1926, %v1925
    %v1928 = vmul.f32 0.5, %v1927
    %v1929 = vsub.f32 1.5, %v1928
    %v1930 = vmul.f32 %v1925, %v1929
    %vm1931 = vweird.f32 %v1890
    %vm1932 = vweird.f32 %v1925
    %vm1933 = vmor %vm1931, %vm1932
    %v1934 = vsel %vm1933, %v1925, %v1930
    %v1935 = vrsqrt.pop %v1891
    %v1936 = vmul.f32 %v1935, %v1891
    %v1937 = vmul.f32 %v1936, %v1935
    %v1938 = vmul.f32 0.5, %v1937
    %v1939 = vsub.f32 1.5, %v1938
    %v1940 = vmul.f32 %v1935, %v1939
    %vm1941 = vweird.f32 %v1891
    %vm1942 = vweird.f32 %v1935
    %vm1943 = vmor %vm1941, %vm1942
    %v1944 = vsel %vm1943, %v1935, %v1940
    %v1945 = vrsqrt.pop %v1892
    %v1946 = vmul.f32 %v1945, %v1892
    %v1947 = vmul.f32 %v1946, %v1945
    %v1948 = vmul.f32 0.5, %v1947
    %v1949 = vsub.f32 1.5, %v1948
    %v1950 = vmul.f32 %v1945, %v1949
    %vm1951 = vweird.f32 %v1892
    %vm1952 = vweird.f32 %v1945
    %vm1953 = vmor %vm1951, %vm1952
    %v1954 = vsel %vm1953, %v1945, %v1950
    %v1955 = vrsqrt.pop %v1893
    %v1956 = vmul.f32 %v1955, %v1893
    %v1957 = vmul.f32 %v1956, %v1955
    %v1958 = vmul.f32 0.5, %v1957
    %v1959 = vsub.f32 1.5, %v1958
    %v1960 = vmul.f32 %v1955, %v1959
    %vm1961 = vweird.f32 %v1893
    %vm1962 = vweird.f32 %v1955
    %vm1963 = vmor %vm1961, %vm1962
    %v1964 = vsel %vm1963, %v1955, %v1960
    %v1965 = vrsqrt.pop %v1894
    %v1966 = vmul.f32 %v1965, %v1894
    %v1967 = vmul.f32 %v1966, %v1965
    %v1968 = vmul.f32 0.5, %v1967
    %v1969 = vsub.f32 1.5, %v1968
    %v1970 = vmul.f32 %v1965, %v1969
    %vm1971 = vweird.f32 %v1894
    %vm1972 = vweird.f32 %v1965
    %vm1973 = vmor %vm1971, %vm1972
    %v1974 = vsel %vm1973, %v1965, %v1970
    %v1975 = vmul.f32 %v1879, %v1904
    %v1976 = vmul.f32 %v1880, %v1914
    %v1977 = vmul.f32 %v1881, %v1924
    %v1978 = vmul.f32 %v1882, %v1934
    %v1979 = vmul.f32 %v1883, %v1944
    %v1980 = vmul.f32 %v1884, %v1954
    %v1981 = vmul.f32 %v1885, %v1964
    %v1982 = vmul.f32 %v1886, %v1974
    %v1983 = vperm.slane %v1710, 0
    %v1984 = vmul.f32 %v1975, %v1983
    %v1985 = vmul.f32 %v1976, %v1983
    %v1986 = vmul.f32 %v1977, %v1983
    %v1987 = vmul.f32 %v1978, %v1983
    %v1988 = vmul.f32 %v1979, %v1983
    %v1989 = vmul.f32 %v1980, %v1983
    %v1990 = vmul.f32 %v1981, %v1983
    %v1991 = vmul.f32 %v1982, %v1983
    %v1992 = vperm.slane %v1711, 0
    %v1993 = vadd.f32 %v1984, %v1992
    %v1994 = vadd.f32 %v1985, %v1992
    %v1995 = vadd.f32 %v1986, %v1992
    %v1996 = vadd.f32 %v1987, %v1992
    %v1997 = vadd.f32 %v1988, %v1992
    %v1998 = vadd.f32 %v1989, %v1992
    %v1999 = vadd.f32 %v1990, %v1992
    %v2000 = vadd.f32 %v1991, %v1992
    %2001 = vst.msk [vmem:[%s10] sm:$0xff] %vm1418, %v1993
    %2002 = vst.msk [vmem:[%s10 + $0x8] sm:$0xff] %vm1418, %v1994
    %2003 = vst.msk [vmem:[%s10 + $0x10] sm:$0xff] %vm1418, %v1995
    %2004 = vst.msk [vmem:[%s10 + $0x18] sm:$0xff] %vm1418, %v1996
    %2005 = vst.msk [vmem:[%s10 + $0x20] sm:$0xff] %vm1418, %v1997
    %2006 = vst.msk [vmem:[%s10 + $0x28] sm:$0xff] %vm1418, %v1998
    %2007 = vst.msk [vmem:[%s10 + $0x30] sm:$0xff] %vm1418, %v1999
    %2008 = vst.msk [vmem:[%s10 + $0x38] sm:$0xff] %vm1418, %v2000
    // Predicated region
    $region54: #{tpu_custom_call.1} parent=1 // pred_check
      _
    $region55: #{tpu_custom_call.1} parent=1 // pred_check_branch
      %2010 = sbr.rel (0) target = $region57
    $region56: #{tpu_custom_call.1} parent=1 // pred_region
      _
    $region57: #{tpu_custom_call.1} parent=1 // pred_fallthru
      _
    // Predicated region
    $region58: #{tpu_custom_call.1} parent=1 // pred_check
      _
    $region59: #{tpu_custom_call.1} parent=1 // pred_check_branch
      %2012 = sbr.rel (0) target = $region61
    $region60: #{tpu_custom_call.1} parent=1 // pred_region
      _
    $region61: #{tpu_custom_call.1} parent=1 // pred_fallthru
      _
    %2013 = vsyncpa [#allocation3], 1
    %2014 = vsyncpa [#allocation5], 1

</llo_original>
